<compile_context>
chip_gen: v5e
topology: v5e:2x2
jax: 0.10.0
libtpu: 0.0.40
codegen_flags: <defaults>
</compile_context>

<pallas_src>
import functools

import jax
import jax.numpy as jnp
from jax import lax
from jax.experimental import pallas as pl
from jax.experimental.pallas import tpu as pltpu

EPS = 1e-5
VMEM_LIMIT = 64 * 1024 * 1024


# ----------------------------- in-kernel helpers -----------------------------

def _layernorm(x, scale, shift):
    # PyTorch LayerNorm in module: var(unbiased=False) == mean of sq dev.
    x = x.astype(jnp.float32)
    mean = jnp.mean(x, axis=-1, keepdims=True)
    var = jnp.mean((x - mean) ** 2, axis=-1, keepdims=True)
    return scale.astype(jnp.float32) * (x - mean) / jnp.sqrt(var + EPS) \
        + shift.astype(jnp.float32)


def _gelu(x):
    # Tanh approximation, matching the reference module's custom GELU.
    c = jnp.sqrt(2.0 / jnp.pi).astype(x.dtype)
    return 0.5 * x * (1.0 + jnp.tanh(c * (x + 0.044715 * x ** 3)))


# ------------------------------ Pallas kernels -------------------------------

def transformer_block_kernel(x_ref,
                             ln1_s_ref, ln1_b_ref,
                             wqkv_ref, wo_ref, bo_ref,
                             ln2_s_ref, ln2_b_ref,
                             w1_ref, b1_ref, w2_ref, b2_ref,
                             out_ref, *, num_heads):
    """One full transformer block for a single batch element (grid over batch)."""
    x = x_ref[0].astype(jnp.float32)           # (T, E) residual stream in f32
    T, E = x.shape
    H = num_heads
    D = E // H

    # --- attention sub-block ---
    h = _layernorm(x, ln1_s_ref[...], ln1_b_ref[...])             # (T, E) f32
    qkv = jnp.dot(h.astype(jnp.bfloat16), wqkv_ref[...],
                  preferred_element_type=jnp.float32)             # (T, 3E) f32

    q = qkv[:, :E].astype(jnp.bfloat16).reshape(T, H, D)
    k = qkv[:, E:2 * E].astype(jnp.bfloat16).reshape(T, H, D)
    v = qkv[:, 2 * E:].astype(jnp.bfloat16).reshape(T, H, D)
    qh = jnp.transpose(q, (1, 0, 2))                              # (H, T, D)
    kh = jnp.transpose(k, (1, 0, 2))
    vh = jnp.transpose(v, (1, 0, 2))

    # Causal mask built once; scale before masking; finite mask value.
    row = lax.broadcasted_iota(jnp.int32, (T, T), 0)
    col = lax.broadcasted_iota(jnp.int32, (T, T), 1)
    causal = col > row                                            # strict upper
    inv_sqrt_d = jnp.float32(1.0 / (D ** 0.5))

    scores = jnp.einsum('hqd,hkd->hqk', qh, kh,
                        preferred_element_type=jnp.float32)       # (H, T, T)
    scores = scores * inv_sqrt_d
    scores = jnp.where(causal[None, :, :], jnp.float32(-1e30), scores)

    smax = jnp.max(scores, axis=-1, keepdims=True)
    probs = jnp.exp(scores - smax)
    probs = probs * pl.reciprocal(jnp.sum(probs, axis=-1, keepdims=True),
                                  approx=True)                    # f32 softmax

    ctx = jnp.einsum('hqk,hkd->hqd', probs.astype(jnp.bfloat16), vh,
                     preferred_element_type=jnp.float32)          # (H, T, D)
    ctx = jnp.transpose(ctx, (1, 0, 2)).reshape(T, E)             # (T, E) f32

    attn_out = jnp.dot(ctx.astype(jnp.bfloat16), wo_ref[...],
                       preferred_element_type=jnp.float32) \
        + bo_ref[...].astype(jnp.float32)
    x1 = attn_out + x                                             # residual

    # --- feed-forward sub-block ---
    h2 = _layernorm(x1, ln2_s_ref[...], ln2_b_ref[...])
    hidden = jnp.dot(h2.astype(jnp.bfloat16), w1_ref[...],
                     preferred_element_type=jnp.float32) \
        + b1_ref[...].astype(jnp.float32)
    hidden = _gelu(hidden)                                        # f32
    ff = jnp.dot(hidden.astype(jnp.bfloat16), w2_ref[...],
                 preferred_element_type=jnp.float32) \
        + b2_ref[...].astype(jnp.float32)

    out_ref[0] = (ff + x1).astype(out_ref.dtype)


def final_norm_logits_kernel(x_ref, ln_s_ref, ln_b_ref, wout_ref, out_ref):
    """Final LayerNorm + one vocab tile of the output projection."""
    x = x_ref[0].astype(jnp.float32)                              # (T, E)
    h = _layernorm(x, ln_s_ref[...], ln_b_ref[...]).astype(jnp.bfloat16)
    out_ref[0] = jnp.dot(h, wout_ref[...],
                         preferred_element_type=jnp.float32).astype(out_ref.dtype)


# ------------------------------ JAX-side wrappers -----------------------------

def run_transformer_block(x, params, num_heads):
    B, T, E = x.shape
    E3, H4 = 3 * E, 4 * E

    def wfull(shape):
        return pl.BlockSpec(shape, lambda b: (0,) * len(shape))

    in_specs = [
        pl.BlockSpec((1, T, E), lambda b: (b, 0, 0)),   # x
        wfull((1, E)), wfull((1, E)),                   # ln1 scale / shift
        wfull((E, E3)),                                 # Wqkv (fused)
        wfull((E, E)), wfull((1, E)),                   # Wo, bo
        wfull((1, E)), wfull((1, E)),                   # ln2 scale / shift
        wfull((E, H4)), wfull((1, H4)),                 # W1, b1
        wfull((H4, E)), wfull((1, E)),                  # W2, b2
    ]
    return pl.pallas_call(
        functools.partial(transformer_block_kernel, num_heads=num_heads),
        out_shape=jax.ShapeDtypeStruct((B, T, E), jnp.bfloat16),
        grid=(B,),
        in_specs=in_specs,
        out_specs=pl.BlockSpec((1, T, E), lambda b: (b, 0, 0)),
        compiler_params=pltpu.CompilerParams(
            dimension_semantics=("parallel",),
            vmem_limit_bytes=VMEM_LIMIT),
    )(x, *params)


def run_final_head(x, ln_scale, ln_shift, w_out, *, tile_v=1024):
    B, T, E = x.shape
    V = w_out.shape[1]
    TV = min(V, tile_v)
    grid = (B, pl.cdiv(V, TV))

    in_specs = [
        pl.BlockSpec((1, T, E), lambda b, j: (b, 0, 0)),   # x (resident over j)
        pl.BlockSpec((1, E), lambda b, j: (0, 0)),
        pl.BlockSpec((1, E), lambda b, j: (0, 0)),
        pl.BlockSpec((E, TV), lambda b, j: (0, j)),        # streamed vocab tile
    ]
    return pl.pallas_call(
        final_norm_logits_kernel,
        out_shape=jax.ShapeDtypeStruct((B, T, V), jnp.float32),
        grid=grid,
        in_specs=in_specs,
        out_specs=pl.BlockSpec((1, T, TV), lambda b, j: (b, 0, j)),
        compiler_params=pltpu.CompilerParams(
            dimension_semantics=("parallel", "parallel"),
            vmem_limit_bytes=VMEM_LIMIT),
    )(x, ln_scale, ln_shift, w_out)


# ------------------------------ parameter setup -------------------------------

def init_params(key, cfg):
    V, C, E = cfg["vocab_size"], cfg["context_length"], cfg["embedding_dim"]
    E3, H4 = 3 * E, 4 * E
    wdt = jnp.bfloat16

    def nrm(k, shape, scale=0.02):
        return (scale * jax.random.normal(k, shape, dtype=jnp.float32)).astype(wdt)

    keys = jax.random.split(key, 2 + cfg["num_layers"] * 4 + 1)
    it = iter(keys)

    params = {
        "tok_emb": nrm(next(it), (V, E)),
        "pos_emb": nrm(next(it), (C, E)),
        "blocks": [],
    }
    for _ in range(cfg["num_layers"]):
        blk = (
            jnp.ones((1, E), jnp.float32),               # ln1 scale
            jnp.zeros((1, E), jnp.float32),              # ln1 shift
            nrm(next(it), (E, E3)),                      # Wqkv (q|k|v fused)
            nrm(next(it), (E, E)),                       # Wo
            jnp.zeros((1, E), jnp.float32),              # bo
            jnp.ones((1, E), jnp.float32),               # ln2 scale
            jnp.zeros((1, E), jnp.float32),              # ln2 shift
            nrm(next(it), (E, H4)),                      # W1
            jnp.zeros((1, H4), jnp.float32),             # b1
            nrm(next(it), (H4, E)),                      # W2
            jnp.zeros((1, E), jnp.float32),              # b2
        )
        params["blocks"].append(blk)
    params["final_ln_scale"] = jnp.ones((1, E), jnp.float32)
    params["final_ln_shift"] = jnp.zeros((1, E), jnp.float32)
    params["w_out"] = nrm(next(it), (E, V))              # no bias
    return params


def gpt_forward(input_indices, params, cfg):
    B, T = input_indices.shape
    # Embedding lookups + positional add are gather glue in plain JAX.
    tok = jnp.take(params["tok_emb"], input_indices, axis=0)        # (B, T, E)
    pos = params["pos_emb"][:T][None, :, :]                         # (1, T, E)
    x = (tok.astype(jnp.float32) + pos.astype(jnp.float32)).astype(jnp.bfloat16)
    # embedding dropout: rate = 0.0 -> identity
    for blk in params["blocks"]:
        x = run_transformer_block(x, blk, cfg["num_heads"])
    return run_final_head(x, params["final_ln_scale"],
                          params["final_ln_shift"], params["w_out"])


# ----------------------------------- main -------------------------------------

if __name__ == "__main__":
    cfg = {
        "vocab_size": 256,
        "context_length": 16,
        "embedding_dim": 128,   # lane-dense (multiple of 128)
        "num_heads": 4,
        "num_layers": 2,
        "dropout_rate": 0.0,
        "qkv_bias": False,
    }
    key = jax.random.PRNGKey(0)
    pkey, ikey = jax.random.split(key)
    params = init_params(pkey, cfg)

    B, T = 2, cfg["context_length"]
    input_indices = jax.random.randint(ikey, (B, T), 0, cfg["vocab_size"],
                                       dtype=jnp.int32)

    logits = gpt_forward(input_indices, params, cfg)
    jax.block_until_ready(logits)
    assert logits.shape == (B, T, cfg["vocab_size"])
    assert bool(jnp.all(jnp.isfinite(logits)))
    print("KERNEL_OK")
</pallas_src>

<mosaic_0001>
module attributes {stable_mosaic.version = 11 : i64} {
  func.func @transformer_block_kernel(%arg0: i32, %arg1: memref<1x16x128xbf16, #tpu.memory_space<vmem>>, %arg2: memref<1x128xf32, #tpu.memory_space<vmem>>, %arg3: memref<1x128xf32, #tpu.memory_space<vmem>>, %arg4: memref<128x384xbf16, #tpu.memory_space<vmem>>, %arg5: memref<128x128xbf16, #tpu.memory_space<vmem>>, %arg6: memref<1x128xf32, #tpu.memory_space<vmem>>, %arg7: memref<1x128xf32, #tpu.memory_space<vmem>>, %arg8: memref<1x128xf32, #tpu.memory_space<vmem>>, %arg9: memref<128x512xbf16, #tpu.memory_space<vmem>>, %arg10: memref<1x512xf32, #tpu.memory_space<vmem>>, %arg11: memref<512x128xbf16, #tpu.memory_space<vmem>>, %arg12: memref<1x128xf32, #tpu.memory_space<vmem>>, %arg13: memref<1x16x128xbf16, #tpu.memory_space<vmem>>) attributes {dimension_semantics = [#tpu.dimension_semantics<parallel>], iteration_bounds = array<i64: 2>, scalar_prefetch = 0 : i64, scratch_operands = 0 : i64, tpu.core_type = #tpu.core_type<tc>, window_params = [{transform_indices = @transform_0, window_bounds = array<i64: 1, 16, 128>}, {pipeline_mode = #tpu.pipeline_mode<synchronous>, transform_indices = @transform_1, window_bounds = array<i64: 1, 128>}, {pipeline_mode = #tpu.pipeline_mode<synchronous>, transform_indices = @transform_2, window_bounds = array<i64: 1, 128>}, {pipeline_mode = #tpu.pipeline_mode<synchronous>, transform_indices = @transform_3, window_bounds = array<i64: 128, 384>}, {pipeline_mode = #tpu.pipeline_mode<synchronous>, transform_indices = @transform_4, window_bounds = array<i64: 128, 128>}, {pipeline_mode = #tpu.pipeline_mode<synchronous>, transform_indices = @transform_5, window_bounds = array<i64: 1, 128>}, {pipeline_mode = #tpu.pipeline_mode<synchronous>, transform_indices = @transform_6, window_bounds = array<i64: 1, 128>}, {pipeline_mode = #tpu.pipeline_mode<synchronous>, transform_indices = @transform_7, window_bounds = array<i64: 1, 128>}, {pipeline_mode = #tpu.pipeline_mode<synchronous>, transform_indices = @transform_8, window_bounds = array<i64: 128, 512>}, {pipeline_mode = #tpu.pipeline_mode<synchronous>, transform_indices = @transform_9, window_bounds = array<i64: 1, 512>}, {pipeline_mode = #tpu.pipeline_mode<synchronous>, transform_indices = @transform_10, window_bounds = array<i64: 512, 128>}, {pipeline_mode = #tpu.pipeline_mode<synchronous>, transform_indices = @transform_11, window_bounds = array<i64: 1, 128>}, {transform_indices = @transform_12, window_bounds = array<i64: 1, 16, 128>}]} {
    %c0 = arith.constant 0 : index
    %c0_0 = arith.constant 0 : index
    %c0_1 = arith.constant 0 : index
    %0 = vector.load %arg1[%c0, %c0_0, %c0_1] : memref<1x16x128xbf16, #tpu.memory_space<vmem>>, vector<1x16x128xbf16>
    %1 = vector.shape_cast %0 : vector<1x16x128xbf16> to vector<16x128xbf16>
    %2 = arith.extf %1 : vector<16x128xbf16> to vector<16x128xf32>
    %c0_2 = arith.constant 0 : index
    %c0_3 = arith.constant 0 : index
    %3 = vector.load %arg2[%c0_2, %c0_3] : memref<1x128xf32, #tpu.memory_space<vmem>>, vector<1x128xf32>
    %c0_4 = arith.constant 0 : index
    %c0_5 = arith.constant 0 : index
    %4 = vector.load %arg3[%c0_4, %c0_5] : memref<1x128xf32, #tpu.memory_space<vmem>>, vector<1x128xf32>
    %cst = arith.constant dense<0.000000e+00> : vector<16xf32>
    %5 = vector.multi_reduction <add>, %2, %cst [1] : vector<16x128xf32> to vector<16xf32>
    %6 = vector.shape_cast %5 : vector<16xf32> to vector<16x1xf32>
    %cst_6 = arith.constant 1.280000e+02 : f32
    %7 = vector.broadcast %cst_6 : f32 to vector<16x1xf32>
    %8 = arith.divf %6, %7 : vector<16x1xf32>
    %9 = vector.broadcast %8 : vector<16x1xf32> to vector<16x128xf32>
    %10 = arith.subf %2, %9 : vector<16x128xf32>
    %11 = arith.mulf %10, %10 : vector<16x128xf32>
    %cst_7 = arith.constant dense<0.000000e+00> : vector<16xf32>
    %12 = vector.multi_reduction <add>, %11, %cst_7 [1] : vector<16x128xf32> to vector<16xf32>
    %13 = vector.shape_cast %12 : vector<16xf32> to vector<16x1xf32>
    %cst_8 = arith.constant 1.280000e+02 : f32
    %14 = vector.broadcast %cst_8 : f32 to vector<16x1xf32>
    %15 = arith.divf %13, %14 : vector<16x1xf32>
    %16 = vector.broadcast %8 : vector<16x1xf32> to vector<16x128xf32>
    %17 = arith.subf %2, %16 : vector<16x128xf32>
    %18 = vector.broadcast %3 : vector<1x128xf32> to vector<16x128xf32>
    %19 = arith.mulf %18, %17 : vector<16x128xf32>
    %cst_9 = arith.constant 9.99999974E-6 : f32
    %20 = vector.broadcast %cst_9 : f32 to vector<16x1xf32>
    %21 = arith.addf %15, %20 : vector<16x1xf32>
    %22 = math.sqrt %21 : vector<16x1xf32>
    %23 = vector.broadcast %22 : vector<16x1xf32> to vector<16x128xf32>
    %24 = arith.divf %19, %23 : vector<16x128xf32>
    %25 = vector.broadcast %4 : vector<1x128xf32> to vector<16x128xf32>
    %26 = arith.addf %24, %25 : vector<16x128xf32>
    %27 = arith.truncf %26 : vector<16x128xf32> to vector<16x128xbf16>
    %c0_10 = arith.constant 0 : index
    %c0_11 = arith.constant 0 : index
    %28 = vector.load %arg4[%c0_10, %c0_11] : memref<128x384xbf16, #tpu.memory_space<vmem>>, vector<128x384xbf16>
    %cst_12 = arith.constant dense<0.000000e+00> : vector<16x384xf32>
    %29 = tpu.matmul %27, %28, %cst_12 {dimension_numbers = #tpu.dot_dimension_numbers<[1], [0], [0], [1], [0, 0, 1, 1], [], []>} : vector<16x128xbf16>, vector<128x384xbf16>, vector<16x384xf32> -> vector<16x384xf32>
    %30 = vector.extract_strided_slice %29 {offsets = [0, 0], sizes = [16, 128], strides = [1, 1]} : vector<16x384xf32> to vector<16x128xf32>
    %31 = arith.truncf %30 : vector<16x128xf32> to vector<16x128xbf16>
    %32 = vector.shape_cast %31 : vector<16x128xbf16> to vector<16x4x32xbf16>
    %33 = vector.extract_strided_slice %29 {offsets = [0, 128], sizes = [16, 128], strides = [1, 1]} : vector<16x384xf32> to vector<16x128xf32>
    %34 = arith.truncf %33 : vector<16x128xf32> to vector<16x128xbf16>
    %35 = vector.shape_cast %34 : vector<16x128xbf16> to vector<16x4x32xbf16>
    %36 = vector.extract_strided_slice %29 {offsets = [0, 256], sizes = [16, 128], strides = [1, 1]} : vector<16x384xf32> to vector<16x128xf32>
    %37 = arith.truncf %36 : vector<16x128xf32> to vector<16x128xbf16>
    %38 = vector.shape_cast %37 : vector<16x128xbf16> to vector<16x4x32xbf16>
    %39 = tpu.transpose %32, [1, 0, 2] : vector<16x4x32xbf16> -> vector<4x16x32xbf16>
    %40 = tpu.transpose %35, [1, 0, 2] : vector<16x4x32xbf16> -> vector<4x16x32xbf16>
    %41 = tpu.transpose %38, [1, 0, 2] : vector<16x4x32xbf16> -> vector<4x16x32xbf16>
    %42 = tpu.iota {dimensions = array<i32: 0>} : vector<16x16xi32>
    %43 = tpu.iota {dimensions = array<i32: 1>} : vector<16x16xi32>
    %44 = arith.cmpi sgt, %43, %42 : vector<16x16xi32>
    "tpu.trace_start"() <{level = 10 : i32, message = "hqd,hkd->hqk"}> : () -> ()
    %cst_13 = arith.constant dense<0.000000e+00> : vector<4x16x16xf32>
    %45 = tpu.matmul %39, %40, %cst_13 {dimension_numbers = #tpu.dot_dimension_numbers<[2], [2], [1], [1], [0, 0, 0, 1, 1, 1], [0], [0]>} : vector<4x16x32xbf16>, vector<4x16x32xbf16>, vector<4x16x16xf32> -> vector<4x16x16xf32>
    "tpu.trace_stop"() : () -> ()
    %cst_14 = arith.constant 0.176776692 : f32
    %46 = vector.broadcast %cst_14 : f32 to vector<4x16x16xf32>
    %47 = arith.mulf %45, %46 : vector<4x16x16xf32>
    %48 = vector.shape_cast %44 : vector<16x16xi1> to vector<1x16x16xi1>
    %cst_15 = arith.constant -1.000000e+30 : f32
    %49 = vector.shape_cast %48 : vector<1x16x16xi1> to vector<1x16x16xi1>
    %50 = vector.broadcast %49 : vector<1x16x16xi1> to vector<4x16x16xi1>
    %51 = vector.broadcast %cst_15 : f32 to vector<4x16x16xf32>
    %52 = arith.select %50, %51, %47 : vector<4x16x16xi1>, vector<4x16x16xf32>
    %cst_16 = arith.constant dense<0xFF800000> : vector<4x16xf32>
    %53 = vector.multi_reduction <maximumf>, %52, %cst_16 [2] : vector<4x16x16xf32> to vector<4x16xf32>
    %54 = vector.shape_cast %53 : vector<4x16xf32> to vector<4x16x1xf32>
    %55 = vector.broadcast %54 : vector<4x16x1xf32> to vector<4x16x16xf32>
    %56 = arith.subf %52, %55 : vector<4x16x16xf32>
    %57 = math.exp %56 : vector<4x16x16xf32>
    %cst_17 = arith.constant dense<0.000000e+00> : vector<4x16xf32>
    %58 = vector.multi_reduction <add>, %57, %cst_17 [2] : vector<4x16x16xf32> to vector<4x16xf32>
    %59 = vector.shape_cast %58 : vector<4x16xf32> to vector<4x16x1xf32>
    %60 = tpu.reciprocal %59 {approx = true} : vector<4x16x1xf32> -> vector<4x16x1xf32>
    %61 = vector.broadcast %60 : vector<4x16x1xf32> to vector<4x16x16xf32>
    %62 = arith.mulf %57, %61 : vector<4x16x16xf32>
    %63 = arith.truncf %62 : vector<4x16x16xf32> to vector<4x16x16xbf16>
    "tpu.trace_start"() <{level = 10 : i32, message = "hqk,hkd->hqd"}> : () -> ()
    %cst_18 = arith.constant dense<0.000000e+00> : vector<4x16x32xf32>
    %64 = tpu.matmul %63, %41, %cst_18 {dimension_numbers = #tpu.dot_dimension_numbers<[2], [1], [1], [2], [0, 0, 0, 1, 1, 2], [0], [0]>} : vector<4x16x16xbf16>, vector<4x16x32xbf16>, vector<4x16x32xf32> -> vector<4x16x32xf32>
    "tpu.trace_stop"() : () -> ()
    %65 = tpu.transpose %64, [1, 0, 2] : vector<4x16x32xf32> -> vector<16x4x32xf32>
    %66 = vector.shape_cast %65 : vector<16x4x32xf32> to vector<16x128xf32>
    %67 = arith.truncf %66 : vector<16x128xf32> to vector<16x128xbf16>
    %c0_19 = arith.constant 0 : index
    %c0_20 = arith.constant 0 : index
    %68 = vector.load %arg5[%c0_19, %c0_20] : memref<128x128xbf16, #tpu.memory_space<vmem>>, vector<128x128xbf16>
    %cst_21 = arith.constant dense<0.000000e+00> : vector<16x128xf32>
    %69 = tpu.matmul %67, %68, %cst_21 {dimension_numbers = #tpu.dot_dimension_numbers<[1], [0], [0], [1], [0, 0, 1, 1], [], []>} : vector<16x128xbf16>, vector<128x128xbf16>, vector<16x128xf32> -> vector<16x128xf32>
    %c0_22 = arith.constant 0 : index
    %c0_23 = arith.constant 0 : index
    %70 = vector.load %arg6[%c0_22, %c0_23] : memref<1x128xf32, #tpu.memory_space<vmem>>, vector<1x128xf32>
    %71 = vector.broadcast %70 : vector<1x128xf32> to vector<16x128xf32>
    %72 = arith.addf %69, %71 : vector<16x128xf32>
    %73 = arith.addf %72, %2 : vector<16x128xf32>
    %c0_24 = arith.constant 0 : index
    %c0_25 = arith.constant 0 : index
    %74 = vector.load %arg7[%c0_24, %c0_25] : memref<1x128xf32, #tpu.memory_space<vmem>>, vector<1x128xf32>
    %c0_26 = arith.constant 0 : index
    %c0_27 = arith.constant 0 : index
    %75 = vector.load %arg8[%c0_26, %c0_27] : memref<1x128xf32, #tpu.memory_space<vmem>>, vector<1x128xf32>
    %cst_28 = arith.constant dense<0.000000e+00> : vector<16xf32>
    %76 = vector.multi_reduction <add>, %73, %cst_28 [1] : vector<16x128xf32> to vector<16xf32>
    %77 = vector.shape_cast %76 : vector<16xf32> to vector<16x1xf32>
    %cst_29 = arith.constant 1.280000e+02 : f32
    %78 = vector.broadcast %cst_29 : f32 to vector<16x1xf32>
    %79 = arith.divf %77, %78 : vector<16x1xf32>
    %80 = vector.broadcast %79 : vector<16x1xf32> to vector<16x128xf32>
    %81 = arith.subf %73, %80 : vector<16x128xf32>
    %82 = arith.mulf %81, %81 : vector<16x128xf32>
    %cst_30 = arith.constant dense<0.000000e+00> : vector<16xf32>
    %83 = vector.multi_reduction <add>, %82, %cst_30 [1] : vector<16x128xf32> to vector<16xf32>
    %84 = vector.shape_cast %83 : vector<16xf32> to vector<16x1xf32>
    %cst_31 = arith.constant 1.280000e+02 : f32
    %85 = vector.broadcast %cst_31 : f32 to vector<16x1xf32>
    %86 = arith.divf %84, %85 : vector<16x1xf32>
    %87 = vector.broadcast %79 : vector<16x1xf32> to vector<16x128xf32>
    %88 = arith.subf %73, %87 : vector<16x128xf32>
    %89 = vector.broadcast %74 : vector<1x128xf32> to vector<16x128xf32>
    %90 = arith.mulf %89, %88 : vector<16x128xf32>
    %cst_32 = arith.constant 9.99999974E-6 : f32
    %91 = vector.broadcast %cst_32 : f32 to vector<16x1xf32>
    %92 = arith.addf %86, %91 : vector<16x1xf32>
    %93 = math.sqrt %92 : vector<16x1xf32>
    %94 = vector.broadcast %93 : vector<16x1xf32> to vector<16x128xf32>
    %95 = arith.divf %90, %94 : vector<16x128xf32>
    %96 = vector.broadcast %75 : vector<1x128xf32> to vector<16x128xf32>
    %97 = arith.addf %95, %96 : vector<16x128xf32>
    %98 = arith.truncf %97 : vector<16x128xf32> to vector<16x128xbf16>
    %c0_33 = arith.constant 0 : index
    %c0_34 = arith.constant 0 : index
    %99 = vector.load %arg9[%c0_33, %c0_34] : memref<128x512xbf16, #tpu.memory_space<vmem>>, vector<128x512xbf16>
    %cst_35 = arith.constant dense<0.000000e+00> : vector<16x512xf32>
    %100 = tpu.matmul %98, %99, %cst_35 {dimension_numbers = #tpu.dot_dimension_numbers<[1], [0], [0], [1], [0, 0, 1, 1], [], []>} : vector<16x128xbf16>, vector<128x512xbf16>, vector<16x512xf32> -> vector<16x512xf32>
    %c0_36 = arith.constant 0 : index
    %c0_37 = arith.constant 0 : index
    %101 = vector.load %arg10[%c0_36, %c0_37] : memref<1x512xf32, #tpu.memory_space<vmem>>, vector<1x512xf32>
    %102 = vector.broadcast %101 : vector<1x512xf32> to vector<16x512xf32>
    %103 = arith.addf %100, %102 : vector<16x512xf32>
    %cst_38 = arith.constant 0.636619746 : f32
    %104 = math.sqrt %cst_38 : f32
    %cst_39 = arith.constant 5.000000e-01 : f32
    %105 = vector.broadcast %cst_39 : f32 to vector<16x512xf32>
    %106 = arith.mulf %105, %103 : vector<16x512xf32>
    %107 = arith.mulf %103, %103 : vector<16x512xf32>
    %108 = arith.mulf %103, %107 : vector<16x512xf32>
    %cst_40 = arith.constant 4.471500e-02 : f32
    %109 = vector.broadcast %cst_40 : f32 to vector<16x512xf32>
    %110 = arith.mulf %109, %108 : vector<16x512xf32>
    %111 = arith.addf %103, %110 : vector<16x512xf32>
    %112 = vector.broadcast %104 : f32 to vector<16x512xf32>
    %113 = arith.mulf %112, %111 : vector<16x512xf32>
    %114 = math.tanh %113 : vector<16x512xf32>
    %cst_41 = arith.constant 1.000000e+00 : f32
    %115 = vector.broadcast %cst_41 : f32 to vector<16x512xf32>
    %116 = arith.addf %115, %114 : vector<16x512xf32>
    %117 = arith.mulf %106, %116 : vector<16x512xf32>
    %118 = arith.truncf %117 : vector<16x512xf32> to vector<16x512xbf16>
    %c0_42 = arith.constant 0 : index
    %c0_43 = arith.constant 0 : index
    %119 = vector.load %arg11[%c0_42, %c0_43] : memref<512x128xbf16, #tpu.memory_space<vmem>>, vector<512x128xbf16>
    %cst_44 = arith.constant dense<0.000000e+00> : vector<16x128xf32>
    %120 = tpu.matmul %118, %119, %cst_44 {dimension_numbers = #tpu.dot_dimension_numbers<[1], [0], [0], [1], [0, 0, 1, 1], [], []>} : vector<16x512xbf16>, vector<512x128xbf16>, vector<16x128xf32> -> vector<16x128xf32>
    %c0_45 = arith.constant 0 : index
    %c0_46 = arith.constant 0 : index
    %121 = vector.load %arg12[%c0_45, %c0_46] : memref<1x128xf32, #tpu.memory_space<vmem>>, vector<1x128xf32>
    %122 = vector.broadcast %121 : vector<1x128xf32> to vector<16x128xf32>
    %123 = arith.addf %120, %122 : vector<16x128xf32>
    %124 = arith.addf %123, %73 : vector<16x128xf32>
    %125 = arith.truncf %124 : vector<16x128xf32> to vector<16x128xbf16>
    %c0_47 = arith.constant 0 : index
    %c0_48 = arith.constant 0 : index
    %c0_49 = arith.constant 0 : index
    %126 = vector.load %arg13[%c0_47, %c0_48, %c0_49] : memref<1x16x128xbf16, #tpu.memory_space<vmem>>, vector<1x16x128xbf16>
    %127 = vector.shape_cast %126 : vector<1x16x128xbf16> to vector<16x128xbf16>
    %128 = vector.shape_cast %125 : vector<16x128xbf16> to vector<1x16x128xbf16>
    tpu.vector_store %arg13[%c0_47, %c0_48, %c0_49], %128 {strides = array<i32>} : memref<1x16x128xbf16, #tpu.memory_space<vmem>>, vector<1x16x128xbf16>,
    return
  }
  func.func @transform_0(%arg0: i32) -> (i32, i32, i32) {
    %c0_i32 = arith.constant 0 : i32
    %c0_i32_0 = arith.constant 0 : i32
    %c0_i32_1 = arith.constant 0 : i32
    return %arg0, %c0_i32, %c0_i32_0 : i32, i32, i32
  }
  func.func @transform_1(%arg0: i32) -> (i32, i32) {
    %c0_i32 = arith.constant 0 : i32
    %c0_i32_0 = arith.constant 0 : i32
    %c0_i32_1 = arith.constant 0 : i32
    return %c0_i32, %c0_i32_0 : i32, i32
  }
  func.func @transform_2(%arg0: i32) -> (i32, i32) {
    %c0_i32 = arith.constant 0 : i32
    %c0_i32_0 = arith.constant 0 : i32
    %c0_i32_1 = arith.constant 0 : i32
    return %c0_i32, %c0_i32_0 : i32, i32
  }
  func.func @transform_3(%arg0: i32) -> (i32, i32) {
    %c0_i32 = arith.constant 0 : i32
    %c0_i32_0 = arith.constant 0 : i32
    %c0_i32_1 = arith.constant 0 : i32
    return %c0_i32, %c0_i32_0 : i32, i32
  }
  func.func @transform_4(%arg0: i32) -> (i32, i32) {
    %c0_i32 = arith.constant 0 : i32
    %c0_i32_0 = arith.constant 0 : i32
    %c0_i32_1 = arith.constant 0 : i32
    return %c0_i32, %c0_i32_0 : i32, i32
  }
  func.func @transform_5(%arg0: i32) -> (i32, i32) {
    %c0_i32 = arith.constant 0 : i32
    %c0_i32_0 = arith.constant 0 : i32
    %c0_i32_1 = arith.constant 0 : i32
    return %c0_i32, %c0_i32_0 : i32, i32
  }
  func.func @transform_6(%arg0: i32) -> (i32, i32) {
    %c0_i32 = arith.constant 0 : i32
    %c0_i32_0 = arith.constant 0 : i32
    %c0_i32_1 = arith.constant 0 : i32
    return %c0_i32, %c0_i32_0 : i32, i32
  }
  func.func @transform_7(%arg0: i32) -> (i32, i32) {
    %c0_i32 = arith.constant 0 : i32
    %c0_i32_0 = arith.constant 0 : i32
    %c0_i32_1 = arith.constant 0 : i32
    return %c0_i32, %c0_i32_0 : i32, i32
  }
  func.func @transform_8(%arg0: i32) -> (i32, i32) {
    %c0_i32 = arith.constant 0 : i32
    %c0_i32_0 = arith.constant 0 : i32
    %c0_i32_1 = arith.constant 0 : i32
    return %c0_i32, %c0_i32_0 : i32, i32
  }
  func.func @transform_9(%arg0: i32) -> (i32, i32) {
    %c0_i32 = arith.constant 0 : i32
    %c0_i32_0 = arith.constant 0 : i32
    %c0_i32_1 = arith.constant 0 : i32
    return %c0_i32, %c0_i32_0 : i32, i32
  }
  func.func @transform_10(%arg0: i32) -> (i32, i32) {
    %c0_i32 = arith.constant 0 : i32
    %c0_i32_0 = arith.constant 0 : i32
    %c0_i32_1 = arith.constant 0 : i32
    return %c0_i32, %c0_i32_0 : i32, i32
  }
  func.func @transform_11(%arg0: i32) -> (i32, i32) {
    %c0_i32 = arith.constant 0 : i32
    %c0_i32_0 = arith.constant 0 : i32
    %c0_i32_1 = arith.constant 0 : i32
    return %c0_i32, %c0_i32_0 : i32, i32
  }
  func.func @transform_12(%arg0: i32) -> (i32, i32, i32) {
    %c0_i32 = arith.constant 0 : i32
    %c0_i32_0 = arith.constant 0 : i32
    %c0_i32_1 = arith.constant 0 : i32
    return %arg0, %c0_i32, %c0_i32_0 : i32, i32, i32
  }
}

</mosaic_0001>

<llo_original>
// kernel: tpu_custom_call.1
$region0: #{tpu_custom_call.1}
  #allocation0 [shape = 'u32[]', space=smem, size = 0x4, offset = 0x4, fixed_abs, tag = 'smem constant byte address 0x4 - core index']
  #allocation1 [shape = 'u32[72,128]{1,0:T(1,128)}', space=vmem, size = 0x9000, scoped, tag = 'internal scratch']
  %s0 = inlined_call_operand.hbm [shape: bf16[2,16,128], index: 0, kind: input, shape index: {}]
  %s1 = inlined_call_operand.hbm [shape: f32[1,128], index: 1, kind: input, shape index: {}]
  %s2 = inlined_call_operand.vmem [shape: f32[1,128], index: 2, kind: input, shape index: {}]
  %s3 = inlined_call_operand.hbm [shape: bf16[128,384], index: 3, kind: input, shape index: {}]
  %s4 = inlined_call_operand.hbm [shape: bf16[128,128], index: 4, kind: input, shape index: {}]
  %s5 = inlined_call_operand.vmem [shape: f32[1,128], index: 5, kind: input, shape index: {}]
  %s6 = inlined_call_operand.vmem [shape: f32[1,128], index: 6, kind: input, shape index: {}]
  %s7 = inlined_call_operand.hbm [shape: f32[1,128], index: 7, kind: input, shape index: {}]
  %s8 = inlined_call_operand.hbm [shape: bf16[128,512], index: 8, kind: input, shape index: {}]
  %s9 = inlined_call_operand.vmem [shape: f32[1,512], index: 9, kind: input, shape index: {}]
  %s10 = inlined_call_operand.hbm [shape: bf16[512,128], index: 10, kind: input, shape index: {}]
  %s11 = inlined_call_operand.vmem [shape: f32[1,128], index: 11, kind: input, shape index: {}]
  %s12 = inlined_call_operand.hbm [shape: bf16[2,16,128], index: 12, kind: output, shape index: {}]
  %s13 = sld [smem:[#allocation0]]
  $region109: #{tpu_custom_call.1} parent=0
    _
  %s15 = ssub.s32 1, %s13
  %s16 = scalar_select 0, %s15, %s13
  $region1: #{tpu_custom_call.1} parent=0
    #allocation2 [shape = 'u8[8192]{0}', space=vmem, size = 0x2000, scoped, tag = 'input window, operand 0']
    #allocation3 [shape = 's32[2]{0}', space=sflag, size = 0x8, scoped, tag = 'scoped memory for tpu_custom_call.1']
    #allocation4 [shape = 's32[2]{0}', space=sflag, size = 0x8, scoped, tag = 'scoped memory for tpu_custom_call.1']
    #allocation5 [shape = 'u8[512]{0}', space=vmem, size = 0x400, scoped, tag = 'input window, operand 1, single buffered']
    #allocation6 [shape = 's32[1]{0}', space=sflag, size = 0x4, scoped, tag = 'scoped memory for tpu_custom_call.1']
    #allocation7 [shape = 'u8[98304]{0}', space=vmem, size = 0x18000, scoped, tag = 'input window, operand 3, single buffered']
    #allocation8 [shape = 'u8[32768]{0}', space=vmem, size = 0x8000, scoped, tag = 'input window, operand 4, single buffered']
    #allocation9 [shape = 's32[1]{0}', space=sflag, size = 0x4, scoped, tag = 'scoped memory for tpu_custom_call.1']
    #allocation10 [shape = 'u8[512]{0}', space=vmem, size = 0x400, scoped, tag = 'input window, operand 7, single buffered']
    #allocation11 [shape = 'u8[131072]{0}', space=vmem, size = 0x20000, scoped, tag = 'input window, operand 8, single buffered']
    #allocation12 [shape = 's32[1]{0}', space=sflag, size = 0x4, scoped, tag = 'scoped memory for tpu_custom_call.1']
    #allocation13 [shape = 'u8[131072]{0}', space=vmem, size = 0x20000, scoped, tag = 'input window, operand 10, single buffered']
    #allocation14 [shape = 'u8[8192]{0}', space=vmem, size = 0x2000, scoped, tag = 'output window, operand 0']
    %17 = vsyncpa [#allocation3], 0
    %s18 = scalar_lea.sflag [#allocation3], 1
    %19 = vsyncpa %s18, 0
    %20 = vsyncpa [#allocation6], 0
    %21 = vsyncpa [#allocation9], 0
    %22 = vsyncpa [#allocation12], 0
    %23 = vsyncpa [#allocation4], 0
    %s24 = scalar_lea.sflag [#allocation4], 1
    %25 = vsyncpa %s24, 0
    loop: start=0, step=1, limit=4
    $region2: #{tpu_custom_call.1} parent=1 // loop_pre_header
      _
    $region3: #{tpu_custom_call.1} parent=1 // loop_header
      %s27 = sphi 0, %s31
      %p28 = scmp.ge.s32.totalorder %s27, 4
      %s37 = sphi 0, %s39
      %s40 = sphi 0, %s37
      %s41 = sphi 0, %s40
      %s57 = sphi 0, %s41
      %s61 = sphi 0, %s61
      %s63 = sphi 0, %s61
      %s64 = sphi 0, %s63
      %s78 = sphi 0, %s64
      %s82 = sphi 0, %s82
      %s84 = sphi 0, %s82
      %s85 = sphi 0, %s84
      %s99 = sphi 0, %s85
      %s103 = sphi 0, %s103
      %s105 = sphi 0, %s103
      %s106 = sphi 0, %s105
      %s120 = sphi 0, %s106
      %s124 = sphi 0, %s124
      %s126 = sphi 0, %s124
      %s127 = sphi 0, %s126
      %s141 = sphi 0, %s127
      %s145 = sphi 0, %s145
      %s147 = sphi 0, %s145
      %s148 = sphi 0, %s147
      %s162 = sphi 0, %s148
      %s166 = sphi 0, %s166
      %s168 = sphi 0, %s166
      %s169 = sphi 0, %s168
      %s183 = sphi 0, %s169
      %s187 = sphi 0, %s187
      %s189 = sphi 0, %s187
      %s190 = sphi 0, %s189
      %s204 = sphi 0, %s190
      %s208 = sphi 0, %s208
      %s210 = sphi 0, %s208
      %s211 = sphi 0, %s210
      %s225 = sphi 0, %s211
      %s229 = sphi 0, %s229
      %s231 = sphi 0, %s229
      %s232 = sphi 0, %s231
      %s246 = sphi 0, %s232
      %s250 = sphi 0, %s250
      %s252 = sphi 0, %s250
      %s253 = sphi 0, %s252
      %s267 = sphi 0, %s253
      %s271 = sphi 0, %s271
      %s273 = sphi 0, %s271
      %s274 = sphi 0, %s273
      %s288 = sphi 0, %s274
      %s294 = sphi 0, %s296
      %s297 = sphi 0, %s294
      %s298 = sphi 0, %s297
      %s314 = sphi 0, %s298
    $region4: #{tpu_custom_call.1} parent=1 // loop_header_branch
      %30 = sbr.rel (%p28) target = $region8
    $region5: #{tpu_custom_call.1} parent=1 // loop_body
      %s32 = ssub.s32 %s27, 1
      %s33 = ssub.s32 %s27, 2
      %s34 = sadd.s32 %s27, 1
      %s35 = ssub.s32 %s27, %s34
      %p36 = scmp.eq.s32.totalorder %s35, 0
      %s38 = sadd.s32 %s37, 1
      %s39 = scalar_select %p36, %s37, %s38
      %p42 = pneg %p36
      %p43 = scmp.eq.s32.totalorder %s27, 1
      %p44 = por %p42, %p43
      %p45 = scmp.ne.s32.totalorder %s37, %s40
      %p46 = scmp.eq.s32.totalorder %s27, 0
      %p47 = por %p45, %p46
      %p48 = scmp.ne.s32.totalorder %s37, %s40
      %p49 = scmp.eq.s32.totalorder %s32, 1
      %p50 = por %p48, %p49
      %p51 = scmp.ne.s32.totalorder %s40, %s41
      %p52 = scmp.eq.s32.totalorder %s32, 0
      %p53 = por %p51, %p52
      %p54 = scmp.ne.s32.totalorder %s40, %s41
      %p55 = scmp.eq.s32.totalorder %s33, 1
      %p56 = por %p54, %p55
      %p58 = scmp.ne.s32.totalorder %s41, %s57
      %p59 = scmp.eq.s32.totalorder %s33, 0
      %p60 = por %p58, %p59
      %s62 = sadd.s32 %s61, 1
      %p65 = scmp.eq.s32.totalorder %s27, 1
      %p66 = scmp.ne.s32.totalorder %s61, %s63
      %p67 = scmp.eq.s32.totalorder %s27, 0
      %p68 = por %p66, %p67
      %p69 = scmp.ne.s32.totalorder %s61, %s63
      %p70 = scmp.eq.s32.totalorder %s32, 1
      %p71 = por %p69, %p70
      %p72 = scmp.ne.s32.totalorder %s63, %s64
      %p73 = scmp.eq.s32.totalorder %s32, 0
      %p74 = por %p72, %p73
      %p75 = scmp.ne.s32.totalorder %s63, %s64
      %p76 = scmp.eq.s32.totalorder %s33, 1
      %p77 = por %p75, %p76
      %p79 = scmp.ne.s32.totalorder %s64, %s78
      %p80 = scmp.eq.s32.totalorder %s33, 0
      %p81 = por %p79, %p80
      %s83 = sadd.s32 %s82, 1
      %p86 = scmp.eq.s32.totalorder %s27, 1
      %p87 = scmp.ne.s32.totalorder %s82, %s84
      %p88 = scmp.eq.s32.totalorder %s27, 0
      %p89 = por %p87, %p88
      %p90 = scmp.ne.s32.totalorder %s82, %s84
      %p91 = scmp.eq.s32.totalorder %s32, 1
      %p92 = por %p90, %p91
      %p93 = scmp.ne.s32.totalorder %s84, %s85
      %p94 = scmp.eq.s32.totalorder %s32, 0
      %p95 = por %p93, %p94
      %p96 = scmp.ne.s32.totalorder %s84, %s85
      %p97 = scmp.eq.s32.totalorder %s33, 1
      %p98 = por %p96, %p97
      %p100 = scmp.ne.s32.totalorder %s85, %s99
      %p101 = scmp.eq.s32.totalorder %s33, 0
      %p102 = por %p100, %p101
      %s104 = sadd.s32 %s103, 1
      %p107 = scmp.eq.s32.totalorder %s27, 1
      %p108 = scmp.ne.s32.totalorder %s103, %s105
      %p109 = scmp.eq.s32.totalorder %s27, 0
      %p110 = por %p108, %p109
      %p111 = scmp.ne.s32.totalorder %s103, %s105
      %p112 = scmp.eq.s32.totalorder %s32, 1
      %p113 = por %p111, %p112
      %p114 = scmp.ne.s32.totalorder %s105, %s106
      %p115 = scmp.eq.s32.totalorder %s32, 0
      %p116 = por %p114, %p115
      %p117 = scmp.ne.s32.totalorder %s105, %s106
      %p118 = scmp.eq.s32.totalorder %s33, 1
      %p119 = por %p117, %p118
      %p121 = scmp.ne.s32.totalorder %s106, %s120
      %p122 = scmp.eq.s32.totalorder %s33, 0
      %p123 = por %p121, %p122
      %s125 = sadd.s32 %s124, 1
      %p128 = scmp.eq.s32.totalorder %s27, 1
      %p129 = scmp.ne.s32.totalorder %s124, %s126
      %p130 = scmp.eq.s32.totalorder %s27, 0
      %p131 = por %p129, %p130
      %p132 = scmp.ne.s32.totalorder %s124, %s126
      %p133 = scmp.eq.s32.totalorder %s32, 1
      %p134 = por %p132, %p133
      %p135 = scmp.ne.s32.totalorder %s126, %s127
      %p136 = scmp.eq.s32.totalorder %s32, 0
      %p137 = por %p135, %p136
      %p138 = scmp.ne.s32.totalorder %s126, %s127
      %p139 = scmp.eq.s32.totalorder %s33, 1
      %p140 = por %p138, %p139
      %p142 = scmp.ne.s32.totalorder %s127, %s141
      %p143 = scmp.eq.s32.totalorder %s33, 0
      %p144 = por %p142, %p143
      %s146 = sadd.s32 %s145, 1
      %p149 = scmp.eq.s32.totalorder %s27, 1
      %p150 = scmp.ne.s32.totalorder %s145, %s147
      %p151 = scmp.eq.s32.totalorder %s27, 0
      %p152 = por %p150, %p151
      %p153 = scmp.ne.s32.totalorder %s145, %s147
      %p154 = scmp.eq.s32.totalorder %s32, 1
      %p155 = por %p153, %p154
      %p156 = scmp.ne.s32.totalorder %s147, %s148
      %p157 = scmp.eq.s32.totalorder %s32, 0
      %p158 = por %p156, %p157
      %p159 = scmp.ne.s32.totalorder %s147, %s148
      %p160 = scmp.eq.s32.totalorder %s33, 1
      %p161 = por %p159, %p160
      %p163 = scmp.ne.s32.totalorder %s148, %s162
      %p164 = scmp.eq.s32.totalorder %s33, 0
      %p165 = por %p163, %p164
      %s167 = sadd.s32 %s166, 1
      %p170 = scmp.eq.s32.totalorder %s27, 1
      %p171 = scmp.ne.s32.totalorder %s166, %s168
      %p172 = scmp.eq.s32.totalorder %s27, 0
      %p173 = por %p171, %p172
      %p174 = scmp.ne.s32.totalorder %s166, %s168
      %p175 = scmp.eq.s32.totalorder %s32, 1
      %p176 = por %p174, %p175
      %p177 = scmp.ne.s32.totalorder %s168, %s169
      %p178 = scmp.eq.s32.totalorder %s32, 0
      %p179 = por %p177, %p178
      %p180 = scmp.ne.s32.totalorder %s168, %s169
      %p181 = scmp.eq.s32.totalorder %s33, 1
      %p182 = por %p180, %p181
      %p184 = scmp.ne.s32.totalorder %s169, %s183
      %p185 = scmp.eq.s32.totalorder %s33, 0
      %p186 = por %p184, %p185
      %s188 = sadd.s32 %s187, 1
      %p191 = scmp.eq.s32.totalorder %s27, 1
      %p192 = scmp.ne.s32.totalorder %s187, %s189
      %p193 = scmp.eq.s32.totalorder %s27, 0
      %p194 = por %p192, %p193
      %p195 = scmp.ne.s32.totalorder %s187, %s189
      %p196 = scmp.eq.s32.totalorder %s32, 1
      %p197 = por %p195, %p196
      %p198 = scmp.ne.s32.totalorder %s189, %s190
      %p199 = scmp.eq.s32.totalorder %s32, 0
      %p200 = por %p198, %p199
      %p201 = scmp.ne.s32.totalorder %s189, %s190
      %p202 = scmp.eq.s32.totalorder %s33, 1
      %p203 = por %p201, %p202
      %p205 = scmp.ne.s32.totalorder %s190, %s204
      %p206 = scmp.eq.s32.totalorder %s33, 0
      %p207 = por %p205, %p206
      %s209 = sadd.s32 %s208, 1
      %p212 = scmp.eq.s32.totalorder %s27, 1
      %p213 = scmp.ne.s32.totalorder %s208, %s210
      %p214 = scmp.eq.s32.totalorder %s27, 0
      %p215 = por %p213, %p214
      %p216 = scmp.ne.s32.totalorder %s208, %s210
      %p217 = scmp.eq.s32.totalorder %s32, 1
      %p218 = por %p216, %p217
      %p219 = scmp.ne.s32.totalorder %s210, %s211
      %p220 = scmp.eq.s32.totalorder %s32, 0
      %p221 = por %p219, %p220
      %p222 = scmp.ne.s32.totalorder %s210, %s211
      %p223 = scmp.eq.s32.totalorder %s33, 1
      %p224 = por %p222, %p223
      %p226 = scmp.ne.s32.totalorder %s211, %s225
      %p227 = scmp.eq.s32.totalorder %s33, 0
      %p228 = por %p226, %p227
      %s230 = sadd.s32 %s229, 1
      %p233 = scmp.eq.s32.totalorder %s27, 1
      %p234 = scmp.ne.s32.totalorder %s229, %s231
      %p235 = scmp.eq.s32.totalorder %s27, 0
      %p236 = por %p234, %p235
      %p237 = scmp.ne.s32.totalorder %s229, %s231
      %p238 = scmp.eq.s32.totalorder %s32, 1
      %p239 = por %p237, %p238
      %p240 = scmp.ne.s32.totalorder %s231, %s232
      %p241 = scmp.eq.s32.totalorder %s32, 0
      %p242 = por %p240, %p241
      %p243 = scmp.ne.s32.totalorder %s231, %s232
      %p244 = scmp.eq.s32.totalorder %s33, 1
      %p245 = por %p243, %p244
      %p247 = scmp.ne.s32.totalorder %s232, %s246
      %p248 = scmp.eq.s32.totalorder %s33, 0
      %p249 = por %p247, %p248
      %s251 = sadd.s32 %s250, 1
      %p254 = scmp.eq.s32.totalorder %s27, 1
      %p255 = scmp.ne.s32.totalorder %s250, %s252
      %p256 = scmp.eq.s32.totalorder %s27, 0
      %p257 = por %p255, %p256
      %p258 = scmp.ne.s32.totalorder %s250, %s252
      %p259 = scmp.eq.s32.totalorder %s32, 1
      %p260 = por %p258, %p259
      %p261 = scmp.ne.s32.totalorder %s252, %s253
      %p262 = scmp.eq.s32.totalorder %s32, 0
      %p263 = por %p261, %p262
      %p264 = scmp.ne.s32.totalorder %s252, %s253
      %p265 = scmp.eq.s32.totalorder %s33, 1
      %p266 = por %p264, %p265
      %p268 = scmp.ne.s32.totalorder %s253, %s267
      %p269 = scmp.eq.s32.totalorder %s33, 0
      %p270 = por %p268, %p269
      %s272 = sadd.s32 %s271, 1
      %p275 = scmp.eq.s32.totalorder %s27, 1
      %p276 = scmp.ne.s32.totalorder %s271, %s273
      %p277 = scmp.eq.s32.totalorder %s27, 0
      %p278 = por %p276, %p277
      %p279 = scmp.ne.s32.totalorder %s271, %s273
      %p280 = scmp.eq.s32.totalorder %s32, 1
      %p281 = por %p279, %p280
      %p282 = scmp.ne.s32.totalorder %s273, %s274
      %p283 = scmp.eq.s32.totalorder %s32, 0
      %p284 = por %p282, %p283
      %p285 = scmp.ne.s32.totalorder %s273, %s274
      %p286 = scmp.eq.s32.totalorder %s33, 1
      %p287 = por %p285, %p286
      %p289 = scmp.ne.s32.totalorder %s274, %s288
      %p290 = scmp.eq.s32.totalorder %s33, 0
      %p291 = por %p289, %p290
      %s292 = ssub.s32 %s27, %s34
      %p293 = scmp.eq.s32.totalorder %s292, 0
      %s295 = sadd.s32 %s294, 1
      %s296 = scalar_select %p293, %s294, %s295
      %p299 = pneg %p293
      %p300 = scmp.eq.s32.totalorder %s27, 1
      %p301 = por %p299, %p300
      %p302 = scmp.ne.s32.totalorder %s294, %s297
      %p303 = scmp.eq.s32.totalorder %s27, 0
      %p304 = por %p302, %p303
      %p305 = scmp.ne.s32.totalorder %s294, %s297
      %p306 = scmp.eq.s32.totalorder %s32, 1
      %p307 = por %p305, %p306
      %p308 = scmp.ne.s32.totalorder %s297, %s298
      %p309 = scmp.eq.s32.totalorder %s32, 0
      %p310 = por %p308, %p309
      %p311 = scmp.ne.s32.totalorder %s297, %s298
      %p312 = scmp.eq.s32.totalorder %s33, 1
      %p313 = por %p311, %p312
      %p315 = scmp.ne.s32.totalorder %s298, %s314
      %p316 = scmp.eq.s32.totalorder %s33, 0
      %p317 = por %p315, %p316
      %p318 = scmp.le.s32.totalorder 1, %s27
      %p319 = scmp.lt.s32.totalorder %s27, 3
      %p320 = pnand %p318, %p319
      %p321 = pneg %p320
      // Predicated region
      $region9: #{tpu_custom_call.1} parent=5 // pred_check
        _
      $region10: #{tpu_custom_call.1} parent=5 // pred_check_branch
        %323 = sbr.rel (%p320) target = $region12
      $region11: #{tpu_custom_call.1} parent=5 // pred_region
        %s324 = ssub.s32 %s27, 1
        // Predicated region
        $region13: #{tpu_custom_call.1} parent=11 // pred_check
          %p325 = pneg %p74
        $region14: #{tpu_custom_call.1} parent=11 // pred_check_branch
          %327 = sbr.rel (%p325) target = $region16
        $region15: #{tpu_custom_call.1} parent=11 // pred_region
          %329 = vsyncadd [#allocation6], 0
          %s331 = sshll.u32 %s1, 4
          %s332 = int_to_ptr.hbm [resolvable:$true] %s331
          %s333 = sshll.u32 [#allocation5], 4
          %s334 = int_to_ptr.vmem [resolvable:$true] %s333
          %336 = dma.hbm_to_vmem [thread:$0]  %s332, 16, %s334, [#allocation6]
        $region16: #{tpu_custom_call.1} parent=11 // pred_fallthru
          _
        // Predicated region
        $region17: #{tpu_custom_call.1} parent=11 // pred_check
          %p337 = pneg %p95
        $region18: #{tpu_custom_call.1} parent=11 // pred_check_branch
          %339 = sbr.rel (%p337) target = $region20
        $region19: #{tpu_custom_call.1} parent=11 // pred_region
          _
        $region20: #{tpu_custom_call.1} parent=11 // pred_fallthru
          _
        // Predicated region
        $region21: #{tpu_custom_call.1} parent=11 // pred_check
          %p340 = pneg %p116
        $region22: #{tpu_custom_call.1} parent=11 // pred_check_branch
          %342 = sbr.rel (%p340) target = $region24
        $region23: #{tpu_custom_call.1} parent=11 // pred_region
          %344 = vsyncadd [#allocation6], 0
          %s345 = sshll.u32 %s3, 4
          %s346 = int_to_ptr.hbm [resolvable:$true] %s345
          %s347 = sshll.u32 [#allocation7], 4
          %s348 = int_to_ptr.vmem [resolvable:$true] %s347
          %353 = dma.hbm_to_vmem [thread:$0]  %s346, 3072, %s348, [#allocation6], 192, 192, 12
        $region24: #{tpu_custom_call.1} parent=11 // pred_fallthru
          _
        // Predicated region
        $region25: #{tpu_custom_call.1} parent=11 // pred_check
          %p354 = pneg %p137
        $region26: #{tpu_custom_call.1} parent=11 // pred_check_branch
          %356 = sbr.rel (%p354) target = $region28
        $region27: #{tpu_custom_call.1} parent=11 // pred_region
          %358 = vsyncadd [#allocation9], 0
          %s359 = sshll.u32 %s4, 4
          %s360 = int_to_ptr.hbm [resolvable:$true] %s359
          %s361 = sshll.u32 [#allocation8], 4
          %s362 = int_to_ptr.vmem [resolvable:$true] %s361
          %367 = dma.hbm_to_vmem [thread:$0]  %s360, 1024, %s362, [#allocation9], 64, 64, 4
        $region28: #{tpu_custom_call.1} parent=11 // pred_fallthru
          _
        // Predicated region
        $region29: #{tpu_custom_call.1} parent=11 // pred_check
          %p368 = pneg %p158
        $region30: #{tpu_custom_call.1} parent=11 // pred_check_branch
          %370 = sbr.rel (%p368) target = $region32
        $region31: #{tpu_custom_call.1} parent=11 // pred_region
          _
        $region32: #{tpu_custom_call.1} parent=11 // pred_fallthru
          _
        // Predicated region
        $region33: #{tpu_custom_call.1} parent=11 // pred_check
          %p371 = pneg %p179
        $region34: #{tpu_custom_call.1} parent=11 // pred_check_branch
          %373 = sbr.rel (%p371) target = $region36
        $region35: #{tpu_custom_call.1} parent=11 // pred_region
          _
        $region36: #{tpu_custom_call.1} parent=11 // pred_fallthru
          _
        // Predicated region
        $region37: #{tpu_custom_call.1} parent=11 // pred_check
          %p374 = pneg %p200
        $region38: #{tpu_custom_call.1} parent=11 // pred_check_branch
          %376 = sbr.rel (%p374) target = $region40
        $region39: #{tpu_custom_call.1} parent=11 // pred_region
          %378 = vsyncadd [#allocation9], 0
          %s380 = sshll.u32 %s7, 4
          %s381 = int_to_ptr.hbm [resolvable:$true] %s380
          %s382 = sshll.u32 [#allocation10], 4
          %s383 = int_to_ptr.vmem [resolvable:$true] %s382
          %385 = dma.hbm_to_vmem [thread:$0]  %s381, 16, %s383, [#allocation9]
        $region40: #{tpu_custom_call.1} parent=11 // pred_fallthru
          _
        // Predicated region
        $region41: #{tpu_custom_call.1} parent=11 // pred_check
          %p386 = pneg %p221
        $region42: #{tpu_custom_call.1} parent=11 // pred_check_branch
          %388 = sbr.rel (%p386) target = $region44
        $region43: #{tpu_custom_call.1} parent=11 // pred_region
          %390 = vsyncadd [#allocation12], 0
          %s391 = sshll.u32 %s8, 4
          %s392 = int_to_ptr.hbm [resolvable:$true] %s391
          %s393 = sshll.u32 [#allocation11], 4
          %s394 = int_to_ptr.vmem [resolvable:$true] %s393
          %399 = dma.hbm_to_vmem [thread:$0]  %s392, 4096, %s394, [#allocation12], 256, 256, 16
        $region44: #{tpu_custom_call.1} parent=11 // pred_fallthru
          _
        // Predicated region
        $region45: #{tpu_custom_call.1} parent=11 // pred_check
          %p400 = pneg %p242
        $region46: #{tpu_custom_call.1} parent=11 // pred_check_branch
          %402 = sbr.rel (%p400) target = $region48
        $region47: #{tpu_custom_call.1} parent=11 // pred_region
          _
        $region48: #{tpu_custom_call.1} parent=11 // pred_fallthru
          _
        // Predicated region
        $region49: #{tpu_custom_call.1} parent=11 // pred_check
          %p403 = pneg %p263
        $region50: #{tpu_custom_call.1} parent=11 // pred_check_branch
          %405 = sbr.rel (%p403) target = $region52
        $region51: #{tpu_custom_call.1} parent=11 // pred_region
          %407 = vsyncadd [#allocation12], 0
          %s408 = sshll.u32 %s10, 4
          %s409 = int_to_ptr.hbm [resolvable:$true] %s408
          %s410 = sshll.u32 [#allocation13], 4
          %s411 = int_to_ptr.vmem [resolvable:$true] %s410
          %416 = dma.hbm_to_vmem [thread:$0]  %s409, 4096, %s411, [#allocation12], 64, 64, 4
        $region52: #{tpu_custom_call.1} parent=11 // pred_fallthru
          _
        // Predicated region
        $region53: #{tpu_custom_call.1} parent=11 // pred_check
          %p417 = pneg %p284
        $region54: #{tpu_custom_call.1} parent=11 // pred_check_branch
          %419 = sbr.rel (%p417) target = $region56
        $region55: #{tpu_custom_call.1} parent=11 // pred_region
          _
        $region56: #{tpu_custom_call.1} parent=11 // pred_fallthru
          _
      $region12: #{tpu_custom_call.1} parent=5 // pred_fallthru
        _
      %p420 = scmp.lt.s32.totalorder %s27, 2
      // Predicated region
      $region57: #{tpu_custom_call.1} parent=5 // pred_check
        %p421 = pneg %p420
      $region58: #{tpu_custom_call.1} parent=5 // pred_check_branch
        %423 = sbr.rel (%p421) target = $region60
      $region59: #{tpu_custom_call.1} parent=5 // pred_region
        // Predicated region
        $region61: #{tpu_custom_call.1} parent=59 // pred_check
          %p424 = pneg %p47
        $region62: #{tpu_custom_call.1} parent=59 // pred_check_branch
          %426 = sbr.rel (%p424) target = $region64
        $region63: #{tpu_custom_call.1} parent=59 // pred_region
          %s427 = sand.u32 %s37, 1
          %s428 = scalar_lea.sflag [#allocation3], %s427
          %s429 = sand.u32 %s37, 1
          %s430 = smul.addr %s429, 8
          %s431 = scalar_lea.vmem [#allocation2], %s430
          %433 = vsyncadd %s428, 0
          %s434 = smul.addr %s27, 2
          %s435 = smul.addr %s434, 4
          %s436 = scalar_lea.hbm %s0, %s435
          %s437 = sshll.u32 %s436, 4
          %s438 = int_to_ptr.hbm [resolvable:$true] %s437
          %s439 = sshll.u32 %s431, 4
          %s440 = int_to_ptr.vmem [resolvable:$true] %s439
          %445 = dma.hbm_to_vmem [thread:$0]  %s438, 128, %s440, %s428, 64, 64, 4
        $region64: #{tpu_custom_call.1} parent=59 // pred_fallthru
          _
      $region60: #{tpu_custom_call.1} parent=5 // pred_fallthru
        _
      %p446 = scmp.le.s32.totalorder 1, %s27
      %p447 = scmp.lt.s32.totalorder %s27, 3
      %p448 = pnand %p446, %p447
      %p449 = pneg %p448
      // Predicated region
      $region65: #{tpu_custom_call.1} parent=5 // pred_check
        _
      $region66: #{tpu_custom_call.1} parent=5 // pred_check_branch
        %451 = sbr.rel (%p448) target = $region68
      $region67: #{tpu_custom_call.1} parent=5 // pred_region
        %s452 = ssub.s32 %s27, 1
        %s453 = sand.u32 %s40, 1
        %s454 = scalar_lea.sflag [#allocation3], %s453
        %s455 = sand.u32 %s40, 1
        %s456 = smul.addr %s455, 8
        %s457 = scalar_lea.vmem [#allocation2], %s456
        // Predicated region
        $region69: #{tpu_custom_call.1} parent=67 // pred_check
          %p458 = pneg %p53
        $region70: #{tpu_custom_call.1} parent=67 // pred_check_branch
          %460 = sbr.rel (%p458) target = $region72
        $region71: #{tpu_custom_call.1} parent=67 // pred_region
          %462 = dma.done %s454, 128
        $region72: #{tpu_custom_call.1} parent=67 // pred_fallthru
          _
        // Predicated region
        $region73: #{tpu_custom_call.1} parent=67 // pred_check
          %p463 = pneg %p74
        $region74: #{tpu_custom_call.1} parent=67 // pred_check_branch
          %465 = sbr.rel (%p463) target = $region76
        $region75: #{tpu_custom_call.1} parent=67 // pred_region
          %467 = dma.done [#allocation6], 16
        $region76: #{tpu_custom_call.1} parent=67 // pred_fallthru
          _
        // Predicated region
        $region77: #{tpu_custom_call.1} parent=67 // pred_check
          %p468 = pneg %p116
        $region78: #{tpu_custom_call.1} parent=67 // pred_check_branch
          %470 = sbr.rel (%p468) target = $region80
        $region79: #{tpu_custom_call.1} parent=67 // pred_region
          %472 = dma.done [#allocation6], 3072
        $region80: #{tpu_custom_call.1} parent=67 // pred_fallthru
          _
        // Predicated region
        $region81: #{tpu_custom_call.1} parent=67 // pred_check
          %p473 = pneg %p137
        $region82: #{tpu_custom_call.1} parent=67 // pred_check_branch
          %475 = sbr.rel (%p473) target = $region84
        $region83: #{tpu_custom_call.1} parent=67 // pred_region
          %477 = dma.done [#allocation9], 1024
        $region84: #{tpu_custom_call.1} parent=67 // pred_fallthru
          _
        // Predicated region
        $region85: #{tpu_custom_call.1} parent=67 // pred_check
          %p478 = pneg %p200
        $region86: #{tpu_custom_call.1} parent=67 // pred_check_branch
          %480 = sbr.rel (%p478) target = $region88
        $region87: #{tpu_custom_call.1} parent=67 // pred_region
          %482 = dma.done [#allocation9], 16
        $region88: #{tpu_custom_call.1} parent=67 // pred_fallthru
          _
        // Predicated region
        $region89: #{tpu_custom_call.1} parent=67 // pred_check
          %p483 = pneg %p221
        $region90: #{tpu_custom_call.1} parent=67 // pred_check_branch
          %485 = sbr.rel (%p483) target = $region92
        $region91: #{tpu_custom_call.1} parent=67 // pred_region
          %487 = dma.done [#allocation12], 4096
        $region92: #{tpu_custom_call.1} parent=67 // pred_fallthru
          _
        // Predicated region
        $region93: #{tpu_custom_call.1} parent=67 // pred_check
          %p488 = pneg %p263
        $region94: #{tpu_custom_call.1} parent=67 // pred_check_branch
          %490 = sbr.rel (%p488) target = $region96
        $region95: #{tpu_custom_call.1} parent=67 // pred_region
          %492 = dma.done [#allocation12], 4096
        $region96: #{tpu_custom_call.1} parent=67 // pred_fallthru
          _
        %s493 = sand.u32 %s40, 1
        %s494 = scalar_lea.sflag [#allocation3], %s493
        %s495 = sand.u32 %s40, 1
        %s496 = smul.addr %s495, 8
        %s497 = scalar_lea.vmem [#allocation2], %s496
        %p498 = pneg %p53
        %p499 = pneg %p50
        %p500 = pneg %p74
        %p501 = pneg %p71
        %p502 = pneg %p95
        %p503 = pneg %p92
        %p504 = pneg %p116
        %p505 = pneg %p113
        %p506 = pneg %p137
        %p507 = pneg %p134
        %p508 = pneg %p158
        %p509 = pneg %p155
        %p510 = pneg %p179
        %p511 = pneg %p176
        %p512 = pneg %p200
        %p513 = pneg %p197
        %p514 = pneg %p221
        %p515 = pneg %p218
        %p516 = pneg %p242
        %p517 = pneg %p239
        %p518 = pneg %p263
        %p519 = pneg %p260
        %p520 = pneg %p284
        %p521 = pneg %p281
        %p522 = pneg %p310
        %p523 = pneg %p307
        %s524 = sand.u32 %s297, 1
        %s525 = scalar_lea.sflag [#allocation4], %s524
        %s526 = sand.u32 %s297, 1
        %s527 = smul.addr %s526, 8
        %s528 = scalar_lea.vmem [#allocation14], %s527
        %v530 = vld [vmem:[%s457] sm:$0xf]
        %v531 = vld [vmem:[%s457 + $0x4] sm:$0xf]
        %v532 = vunpack.c.l.bf16 %v530
        %v533 = vunpack.c.l.bf16 %v531
        %v534 = vld [vmem:[#allocation5] sm:$0x1]
        %v535 = vld [vmem:[%s2] sm:$0x1]
        %536 = vadd.xlane.f32.xlu0 %v532
        %v537 = vpop.xlane.xlu0 %536
        %538 = vadd.xlane.f32.xlu0 %v533
        %v539 = vpop.xlane.xlu0 %538
        %v540 = vrcp.pop 128.0
        %v541 = vmul.f32 128.0, %v540
        %v542 = vsub.f32 1.0, %v541
        %v543 = vmul.f32 %v540, %v542
        %v544 = vadd.f32 %v540, %v543
        %vm545 = vweird.f32 %v540
        %v546 = vsel %vm545, %v540, %v544
        %v547 = vmul.f32 %v537, %v546
        %v548 = vmul.f32 %v539, %v546
        %v549 = vsub.f32 %v532, %v547
        %v550 = vsub.f32 %v533, %v548
        %v551 = vmul.f32 %v549, %v549
        %v552 = vmul.f32 %v550, %v550
        %553 = vadd.xlane.f32.xlu0 %v551
        %v554 = vpop.xlane.xlu0 %553
        %555 = vadd.xlane.f32.xlu0 %v552
        %v556 = vpop.xlane.xlu0 %555
        %v557 = vmul.f32 %v554, %v546
        %v558 = vmul.f32 %v556, %v546
        %v560 = vperm.slane %v534, 0
        %v562 = vmul.f32 %v560, %v549
        %v563 = vmul.f32 %v560, %v550
        %v564 = vadd.f32 %v557, 1e-05
        %v565 = vadd.f32 %v558, 1e-05
        %v566 = vrsqrt.pop %v564
        %v567 = vmul.f32 %v566, %v564
        %v568 = vmul.f32 %v567, %v566
        %v569 = vmul.f32 0.5, %v568
        %v570 = vsub.f32 1.5, %v569
        %v571 = vmul.f32 %v566, %v570
        %v572 = vmul.f32 %v564, %v571
        %vm573 = vcmp.eq.f32.partialorder %v564, inf
        %v574 = vsel %vm573, %v564, %v572
        %vm575 = vcmp.eq.f32.partialorder %v564, 0.0
        %v576 = vand.u32 %v564, 2147483648
        %v577 = vsel %vm575, %v576, %v574
        %v578 = vrsqrt.pop %v565
        %v579 = vmul.f32 %v578, %v565
        %v580 = vmul.f32 %v579, %v578
        %v581 = vmul.f32 0.5, %v580
        %v582 = vsub.f32 1.5, %v581
        %v583 = vmul.f32 %v578, %v582
        %v584 = vmul.f32 %v565, %v583
        %vm585 = vcmp.eq.f32.partialorder %v565, inf
        %v586 = vsel %vm585, %v565, %v584
        %vm587 = vcmp.eq.f32.partialorder %v565, 0.0
        %v588 = vand.u32 %v565, 2147483648
        %v589 = vsel %vm587, %v588, %v586
        %v590 = vrcp.pop %v577
        %v591 = vmul.f32 %v577, %v590
        %v592 = vsub.f32 1.0, %v591
        %v593 = vmul.f32 %v590, %v592
        %v594 = vadd.f32 %v590, %v593
        %vm595 = vweird.f32 %v577
        %vm596 = vweird.f32 %v590
        %vm597 = vmor %vm595, %vm596
        %v598 = vsel %vm597, %v590, %v594
        %v599 = vand.u32 2147483647, %v577
        %vm600 = vcmp.eq.f32.partialorder %v599, 8.507059e+37
        %v601 = vand.u32 %v577, 2147483648
        %v602 = vor.u32 1.1754944e-38, %v601
        %v603 = vsel %vm600, %v602, %v598
        %v604 = vmul.f32 %v562, %v603
        %v605 = vrcp.pop %v589
        %v606 = vmul.f32 %v589, %v605
        %v607 = vsub.f32 1.0, %v606
        %v608 = vmul.f32 %v605, %v607
        %v609 = vadd.f32 %v605, %v608
        %vm610 = vweird.f32 %v589
        %vm611 = vweird.f32 %v605
        %vm612 = vmor %vm610, %vm611
        %v613 = vsel %vm612, %v605, %v609
        %v614 = vand.u32 2147483647, %v589
        %vm615 = vcmp.eq.f32.partialorder %v614, 8.507059e+37
        %v616 = vand.u32 %v589, 2147483648
        %v617 = vor.u32 1.1754944e-38, %v616
        %v618 = vsel %vm615, %v617, %v613
        %v619 = vmul.f32 %v563, %v618
        %v621 = vperm.slane %v535, 0
        %v623 = vadd.f32 %v604, %v621
        %v624 = vadd.f32 %v619, %v621
        %v625 = vpack.c.bf16 %v624, %v623
        %v626 = vld [vmem:[#allocation7] sm:$0xff]
        %v627 = vld [vmem:[#allocation7 + $0x8] sm:$0xf]
        %v628 = vld [vmem:[#allocation7 + $0xc] sm:$0xff]
        %v629 = vld [vmem:[#allocation7 + $0x14] sm:$0xf]
        %v630 = vld [vmem:[#allocation7 + $0x18] sm:$0xff]
        %v631 = vld [vmem:[#allocation7 + $0x20] sm:$0xf]
        %v632 = vld [vmem:[#allocation7 + $0x24] sm:$0xff]
        %v633 = vld [vmem:[#allocation7 + $0x2c] sm:$0xf]
        %v634 = vld [vmem:[#allocation7 + $0x30] sm:$0xff]
        %v635 = vld [vmem:[#allocation7 + $0x38] sm:$0xf]
        %v636 = vld [vmem:[#allocation7 + $0x3c] sm:$0xff]
        %v637 = vld [vmem:[#allocation7 + $0x44] sm:$0xf]
        %v638 = vld [vmem:[#allocation7 + $0x48] sm:$0xff]
        %v639 = vld [vmem:[#allocation7 + $0x50] sm:$0xf]
        %v640 = vld [vmem:[#allocation7 + $0x54] sm:$0xff]
        %v641 = vld [vmem:[#allocation7 + $0x5c] sm:$0xf]
        %v642 = vld [vmem:[#allocation7 + $0x60] sm:$0xff]
        %v643 = vld [vmem:[#allocation7 + $0x68] sm:$0xf]
        %v644 = vld [vmem:[#allocation7 + $0x6c] sm:$0xff]
        %v645 = vld [vmem:[#allocation7 + $0x74] sm:$0xf]
        %v646 = vld [vmem:[#allocation7 + $0x78] sm:$0xff]
        %v647 = vld [vmem:[#allocation7 + $0x80] sm:$0xf]
        %v648 = vld [vmem:[#allocation7 + $0x84] sm:$0xff]
        %v649 = vld [vmem:[#allocation7 + $0x8c] sm:$0xf]
        %v650 = vld [vmem:[#allocation7 + $0x90] sm:$0xff]
        %v651 = vld [vmem:[#allocation7 + $0x98] sm:$0xf]
        %v652 = vld [vmem:[#allocation7 + $0x9c] sm:$0xff]
        %v653 = vld [vmem:[#allocation7 + $0xa4] sm:$0xf]
        %v654 = vld [vmem:[#allocation7 + $0xa8] sm:$0xff]
        %v655 = vld [vmem:[#allocation7 + $0xb0] sm:$0xf]
        %v656 = vld [vmem:[#allocation7 + $0xb4] sm:$0xff]
        %v657 = vld [vmem:[#allocation7 + $0xbc] sm:$0xf]
        %v690 = vunpack.c.l.b16 %v626
        %v691 = vunpack.c.h.b16 %v626
        %v692 = vunpack.c.l.b16 %v627
        %v693 = vunpack.c.l.b16 %v628
        %v694 = vunpack.c.h.b16 %v628
        %v695 = vunpack.c.l.b16 %v629
        %v696 = vunpack.c.l.b16 %v630
        %v697 = vunpack.c.h.b16 %v630
        %v698 = vunpack.c.l.b16 %v631
        %v699 = vunpack.c.l.b16 %v632
        %v700 = vunpack.c.h.b16 %v632
        %v701 = vunpack.c.l.b16 %v633
        %v702 = vunpack.c.l.b16 %v634
        %v703 = vunpack.c.h.b16 %v634
        %v704 = vunpack.c.l.b16 %v635
        %v705 = vunpack.c.l.b16 %v636
        %v706 = vunpack.c.h.b16 %v636
        %v707 = vunpack.c.l.b16 %v637
        %v708 = vunpack.c.l.b16 %v638
        %v709 = vunpack.c.h.b16 %v638
        %v710 = vunpack.c.l.b16 %v639
        %v711 = vunpack.c.l.b16 %v640
        %v712 = vunpack.c.h.b16 %v640
        %v713 = vunpack.c.l.b16 %v641
        %v714 = vunpack.c.l.b16 %v642
        %v715 = vunpack.c.h.b16 %v642
        %v716 = vunpack.c.l.b16 %v643
        %v717 = vunpack.c.l.b16 %v644
        %v718 = vunpack.c.h.b16 %v644
        %v719 = vunpack.c.l.b16 %v645
        %v720 = vunpack.c.l.b16 %v646
        %v721 = vunpack.c.h.b16 %v646
        %v722 = vunpack.c.l.b16 %v647
        %v723 = vunpack.c.l.b16 %v648
        %v724 = vunpack.c.h.b16 %v648
        %v725 = vunpack.c.l.b16 %v649
        %v726 = vunpack.c.l.b16 %v650
        %v727 = vunpack.c.h.b16 %v650
        %v728 = vunpack.c.l.b16 %v651
        %v729 = vunpack.c.l.b16 %v652
        %v730 = vunpack.c.h.b16 %v652
        %v731 = vunpack.c.l.b16 %v653
        %v732 = vunpack.c.l.b16 %v654
        %v733 = vunpack.c.h.b16 %v654
        %v734 = vunpack.c.l.b16 %v655
        %v735 = vunpack.c.l.b16 %v656
        %v736 = vunpack.c.h.b16 %v656
        %v737 = vunpack.c.l.b16 %v657
        %v738 = vpack.c.b16 %v693, %v690
        %v739 = vpack.c.b16 %v694, %v691
        %v740 = vpack.c.b16 %v695, %v692
        %v741 = vpack.c.b16 %v699, %v696
        %v742 = vpack.c.b16 %v700, %v697
        %v743 = vpack.c.b16 %v701, %v698
        %v744 = vpack.c.b16 %v705, %v702
        %v745 = vpack.c.b16 %v706, %v703
        %v746 = vpack.c.b16 %v707, %v704
        %v747 = vpack.c.b16 %v711, %v708
        %v748 = vpack.c.b16 %v712, %v709
        %v749 = vpack.c.b16 %v713, %v710
        %v750 = vpack.c.b16 %v717, %v714
        %v751 = vpack.c.b16 %v718, %v715
        %v752 = vpack.c.b16 %v719, %v716
        %v753 = vpack.c.b16 %v723, %v720
        %v754 = vpack.c.b16 %v724, %v721
        %v755 = vpack.c.b16 %v725, %v722
        %v756 = vpack.c.b16 %v729, %v726
        %v757 = vpack.c.b16 %v730, %v727
        %v758 = vpack.c.b16 %v731, %v728
        %v759 = vpack.c.b16 %v735, %v732
        %v760 = vpack.c.b16 %v736, %v733
        %v761 = vpack.c.b16 %v737, %v734
        %786 = vmatpush.bf16.msra.mxu0 %v759
        %787 = vmatpush.bf16.msra.mxu0 %v756
        %788 = vmatpush.bf16.msra.mxu0 %v753
        %789 = vmatpush.bf16.msra.mxu0 %v750
        %790 = vmatpush.bf16.msra.mxu0 %v747
        %791 = vmatpush.bf16.msra.mxu0 %v744
        %792 = vmatpush.bf16.msra.mxu0 %v741
        %793 = vmatpush.bf16.msra.mxu0 %v738
        %794 = vmatmul.bf16.gmra.mxu0 %v625
        %v795 = vpop.f32.mrf.mxu0
        %v796 = vadd.f32 0.0, %v795
        %v797 = vpop.f32.mrf.mxu0
        %v798 = vadd.f32 0.0, %v797
        %799 = vdwg.mxu0
        %800 = vmatpush.bf16.msra.mxu0 %v760
        %801 = vmatpush.bf16.msra.mxu0 %v757
        %802 = vmatpush.bf16.msra.mxu0 %v754
        %803 = vmatpush.bf16.msra.mxu0 %v751
        %804 = vmatpush.bf16.msra.mxu0 %v748
        %805 = vmatpush.bf16.msra.mxu0 %v745
        %806 = vmatpush.bf16.msra.mxu0 %v742
        %807 = vmatpush.bf16.msra.mxu0 %v739
        %808 = vmatmul.bf16.gmra.mxu0 %v625
        %v809 = vpop.f32.mrf.mxu0
        %v810 = vadd.f32 0.0, %v809
        %v811 = vpop.f32.mrf.mxu0
        %v812 = vadd.f32 0.0, %v811
        %813 = vdwg.mxu0
        %814 = vmatpush.bf16.msra.mxu0 %v761
        %815 = vmatpush.bf16.msra.mxu0 %v758
        %816 = vmatpush.bf16.msra.mxu0 %v755
        %817 = vmatpush.bf16.msra.mxu0 %v752
        %818 = vmatpush.bf16.msra.mxu0 %v749
        %819 = vmatpush.bf16.msra.mxu0 %v746
        %820 = vmatpush.bf16.msra.mxu0 %v743
        %821 = vmatpush.bf16.msra.mxu0 %v740
        %822 = vmatmul.bf16.gmra.mxu0 %v625
        %v823 = vpop.f32.mrf.mxu0
        %v824 = vadd.f32 0.0, %v823
        %v825 = vpop.f32.mrf.mxu0
        %v826 = vadd.f32 0.0, %v825
        %827 = vdwg.mxu0
        %v828 = vpack.c.bf16 %v796, %v796
        %v829 = vpack.c.bf16 %v798, %v798
        %832 = vrot.lane.b32.xlu0 %v828, 96
        %v833 = vpop.permute.xlu0 %832
        %834 = vrot.lane.b32.xlu0 %v829, 96
        %v835 = vpop.permute.xlu0 %834
        %836 = vrot.lane.b32.xlu0 %v828, 64
        %v837 = vpop.permute.xlu0 %836
        %838 = vrot.lane.b32.xlu0 %v829, 64
        %v839 = vpop.permute.xlu0 %838
        %840 = vrot.lane.b32.xlu0 %v828, 32
        %v841 = vpop.permute.xlu0 %840
        %842 = vrot.lane.b32.xlu0 %v829, 32
        %v843 = vpop.permute.xlu0 %842
        %v846 = vpack.i.b16 %v833, %v828
        %v847 = vshrl.u32 %v828, 16
        %v848 = vshrl.u32 %v833, 16
        %v849 = vpack.i.b16 %v848, %v847
        %v852 = vpack.i.b16 %v841, %v837
        %v853 = vshrl.u32 %v837, 16
        %v854 = vshrl.u32 %v841, 16
        %v855 = vpack.i.b16 %v854, %v853
        %v858 = vpack.i.b16 %v835, %v829
        %v859 = vshrl.u32 %v829, 16
        %v860 = vshrl.u32 %v835, 16
        %v861 = vpack.i.b16 %v860, %v859
        %v864 = vpack.i.b16 %v843, %v839
        %v865 = vshrl.u32 %v839, 16
        %v866 = vshrl.u32 %v843, 16
        %v867 = vpack.i.b16 %v866, %v865
        %v870 = vunpack.c.l.s4 1983009808
        %v871 = vunpack.c.0.s8 %v870
        %v872 = vperm.slane %v846, %v871
        %v875 = vunpack.c.l.s4 1983009808
        %v876 = vunpack.c.0.s8 %v875
        %v877 = vperm.slane %v852, %v876
        %v878 = vrot.slane %v877, 4
        %vm879 = vcmask 1047556
        %v880 = vsel %vm879, %v878, %v872
        %v881 = vrot.slane %v872, 4
        %v882 = vsel %vm879, %v877, %v881
        %v884 = vunpack.c.l.s4 1934713408
        %v885 = vunpack.c.0.s8 %v884
        %v886 = vperm.slane %v880, %v885
        %v888 = vunpack.c.l.s4 1934713408
        %v889 = vunpack.c.0.s8 %v888
        %v890 = vperm.slane %v882, %v889
        %v891 = vrot.slane %v886, 4
        %v892 = vsel %vm879, 0, %v891
        %v893 = vrot.slane %v890, 4
        %v894 = vsel %vm879, 0, %v893
        %v897 = vunpack.c.l.s4 1983009808
        %v898 = vunpack.c.0.s8 %v897
        %v899 = vperm.slane %v849, %v898
        %v902 = vunpack.c.l.s4 1983009808
        %v903 = vunpack.c.0.s8 %v902
        %v904 = vperm.slane %v855, %v903
        %v905 = vrot.slane %v904, 4
        %v906 = vsel %vm879, %v905, %v899
        %v907 = vrot.slane %v899, 4
        %v908 = vsel %vm879, %v904, %v907
        %v910 = vunpack.c.l.s4 1934713408
        %v911 = vunpack.c.0.s8 %v910
        %v912 = vperm.slane %v906, %v911
        %v914 = vunpack.c.l.s4 1934713408
        %v915 = vunpack.c.0.s8 %v914
        %v916 = vperm.slane %v908, %v915
        %v917 = vrot.slane %v912, 4
        %v918 = vsel %vm879, 0, %v917
        %v919 = vrot.slane %v916, 4
        %v920 = vsel %vm879, 0, %v919
        %v923 = vunpack.c.l.s4 1983009808
        %v924 = vunpack.c.0.s8 %v923
        %v925 = vperm.slane %v858, %v924
        %v928 = vunpack.c.l.s4 1983009808
        %v929 = vunpack.c.0.s8 %v928
        %v930 = vperm.slane %v864, %v929
        %v931 = vrot.slane %v930, 4
        %v932 = vsel %vm879, %v931, %v925
        %v933 = vrot.slane %v925, 4
        %v934 = vsel %vm879, %v930, %v933
        %v936 = vunpack.c.l.s4 1934713408
        %v937 = vunpack.c.0.s8 %v936
        %v938 = vperm.slane %v932, %v937
        %v940 = vunpack.c.l.s4 1934713408
        %v941 = vunpack.c.0.s8 %v940
        %v942 = vperm.slane %v934, %v941
        %v943 = vrot.slane %v938, 4
        %v944 = vsel %vm879, 0, %v943
        %v945 = vrot.slane %v942, 4
        %v946 = vsel %vm879, 0, %v945
        %v949 = vunpack.c.l.s4 1983009808
        %v950 = vunpack.c.0.s8 %v949
        %v951 = vperm.slane %v861, %v950
        %v954 = vunpack.c.l.s4 1983009808
        %v955 = vunpack.c.0.s8 %v954
        %v956 = vperm.slane %v867, %v955
        %v957 = vrot.slane %v956, 4
        %v958 = vsel %vm879, %v957, %v951
        %v959 = vrot.slane %v951, 4
        %v960 = vsel %vm879, %v956, %v959
        %v962 = vunpack.c.l.s4 1934713408
        %v963 = vunpack.c.0.s8 %v962
        %v964 = vperm.slane %v958, %v963
        %v966 = vunpack.c.l.s4 1934713408
        %v967 = vunpack.c.0.s8 %v966
        %v968 = vperm.slane %v960, %v967
        %v969 = vrot.slane %v964, 4
        %v970 = vsel %vm879, 0, %v969
        %v971 = vrot.slane %v968, 4
        %v972 = vsel %vm879, 0, %v971
        %v973 = vpack.c.bf16 %v810, %v810
        %v974 = vpack.c.bf16 %v812, %v812
        %977 = vrot.lane.b32.xlu0 %v973, 96
        %v978 = vpop.permute.xlu0 %977
        %979 = vrot.lane.b32.xlu0 %v974, 96
        %v980 = vpop.permute.xlu0 %979
        %981 = vrot.lane.b32.xlu0 %v973, 64
        %v982 = vpop.permute.xlu0 %981
        %983 = vrot.lane.b32.xlu0 %v974, 64
        %v984 = vpop.permute.xlu0 %983
        %985 = vrot.lane.b32.xlu0 %v973, 32
        %v986 = vpop.permute.xlu0 %985
        %987 = vrot.lane.b32.xlu0 %v974, 32
        %v988 = vpop.permute.xlu0 %987
        %v991 = vpack.i.b16 %v978, %v973
        %v992 = vshrl.u32 %v973, 16
        %v993 = vshrl.u32 %v978, 16
        %v994 = vpack.i.b16 %v993, %v992
        %v997 = vpack.i.b16 %v986, %v982
        %v998 = vshrl.u32 %v982, 16
        %v999 = vshrl.u32 %v986, 16
        %v1000 = vpack.i.b16 %v999, %v998
        %v1003 = vpack.i.b16 %v980, %v974
        %v1004 = vshrl.u32 %v974, 16
        %v1005 = vshrl.u32 %v980, 16
        %v1006 = vpack.i.b16 %v1005, %v1004
        %v1009 = vpack.i.b16 %v988, %v984
        %v1010 = vshrl.u32 %v984, 16
        %v1011 = vshrl.u32 %v988, 16
        %v1012 = vpack.i.b16 %v1011, %v1010
        %v1015 = vunpack.c.l.s4 1983009808
        %v1016 = vunpack.c.0.s8 %v1015
        %v1017 = vperm.slane %v991, %v1016
        %v1020 = vunpack.c.l.s4 1983009808
        %v1021 = vunpack.c.0.s8 %v1020
        %v1022 = vperm.slane %v997, %v1021
        %v1023 = vrot.slane %v1022, 4
        %v1024 = vsel %vm879, %v1023, %v1017
        %v1025 = vrot.slane %v1017, 4
        %v1026 = vsel %vm879, %v1022, %v1025
        %v1028 = vunpack.c.l.s4 1934713408
        %v1029 = vunpack.c.0.s8 %v1028
        %v1030 = vperm.slane %v1024, %v1029
        %v1032 = vunpack.c.l.s4 1934713408
        %v1033 = vunpack.c.0.s8 %v1032
        %v1034 = vperm.slane %v1026, %v1033
        %v1035 = vrot.slane %v1030, 4
        %v1036 = vsel %vm879, 0, %v1035
        %v1037 = vrot.slane %v1034, 4
        %v1038 = vsel %vm879, 0, %v1037
        %v1041 = vunpack.c.l.s4 1983009808
        %v1042 = vunpack.c.0.s8 %v1041
        %v1043 = vperm.slane %v994, %v1042
        %v1046 = vunpack.c.l.s4 1983009808
        %v1047 = vunpack.c.0.s8 %v1046
        %v1048 = vperm.slane %v1000, %v1047
        %v1049 = vrot.slane %v1048, 4
        %v1050 = vsel %vm879, %v1049, %v1043
        %v1051 = vrot.slane %v1043, 4
        %v1052 = vsel %vm879, %v1048, %v1051
        %v1054 = vunpack.c.l.s4 1934713408
        %v1055 = vunpack.c.0.s8 %v1054
        %v1056 = vperm.slane %v1050, %v1055
        %v1058 = vunpack.c.l.s4 1934713408
        %v1059 = vunpack.c.0.s8 %v1058
        %v1060 = vperm.slane %v1052, %v1059
        %v1061 = vrot.slane %v1056, 4
        %v1062 = vsel %vm879, 0, %v1061
        %v1063 = vrot.slane %v1060, 4
        %v1064 = vsel %vm879, 0, %v1063
        %v1067 = vunpack.c.l.s4 1983009808
        %v1068 = vunpack.c.0.s8 %v1067
        %v1069 = vperm.slane %v1003, %v1068
        %v1072 = vunpack.c.l.s4 1983009808
        %v1073 = vunpack.c.0.s8 %v1072
        %v1074 = vperm.slane %v1009, %v1073
        %v1075 = vrot.slane %v1074, 4
        %v1076 = vsel %vm879, %v1075, %v1069
        %v1077 = vrot.slane %v1069, 4
        %v1078 = vsel %vm879, %v1074, %v1077
        %v1080 = vunpack.c.l.s4 1934713408
        %v1081 = vunpack.c.0.s8 %v1080
        %v1082 = vperm.slane %v1076, %v1081
        %v1084 = vunpack.c.l.s4 1934713408
        %v1085 = vunpack.c.0.s8 %v1084
        %v1086 = vperm.slane %v1078, %v1085
        %v1087 = vrot.slane %v1082, 4
        %v1088 = vsel %vm879, 0, %v1087
        %v1089 = vrot.slane %v1086, 4
        %v1090 = vsel %vm879, 0, %v1089
        %v1093 = vunpack.c.l.s4 1983009808
        %v1094 = vunpack.c.0.s8 %v1093
        %v1095 = vperm.slane %v1006, %v1094
        %v1098 = vunpack.c.l.s4 1983009808
        %v1099 = vunpack.c.0.s8 %v1098
        %v1100 = vperm.slane %v1012, %v1099
        %v1101 = vrot.slane %v1100, 4
        %v1102 = vsel %vm879, %v1101, %v1095
        %v1103 = vrot.slane %v1095, 4
        %v1104 = vsel %vm879, %v1100, %v1103
        %v1106 = vunpack.c.l.s4 1934713408
        %v1107 = vunpack.c.0.s8 %v1106
        %v1108 = vperm.slane %v1102, %v1107
        %v1110 = vunpack.c.l.s4 1934713408
        %v1111 = vunpack.c.0.s8 %v1110
        %v1112 = vperm.slane %v1104, %v1111
        %v1113 = vrot.slane %v1108, 4
        %v1114 = vsel %vm879, 0, %v1113
        %v1115 = vrot.slane %v1112, 4
        %v1116 = vsel %vm879, 0, %v1115
        %v1117 = vpack.c.bf16 %v824, %v824
        %v1118 = vpack.c.bf16 %v826, %v826
        %1121 = vrot.lane.b32.xlu0 %v1117, 96
        %v1122 = vpop.permute.xlu0 %1121
        %1123 = vrot.lane.b32.xlu0 %v1118, 96
        %v1124 = vpop.permute.xlu0 %1123
        %1125 = vrot.lane.b32.xlu0 %v1117, 64
        %v1126 = vpop.permute.xlu0 %1125
        %1127 = vrot.lane.b32.xlu0 %v1118, 64
        %v1128 = vpop.permute.xlu0 %1127
        %1129 = vrot.lane.b32.xlu0 %v1117, 32
        %v1130 = vpop.permute.xlu0 %1129
        %1131 = vrot.lane.b32.xlu0 %v1118, 32
        %v1132 = vpop.permute.xlu0 %1131
        %v1135 = vpack.i.b16 %v1122, %v1117
        %v1136 = vshrl.u32 %v1117, 16
        %v1137 = vshrl.u32 %v1122, 16
        %v1138 = vpack.i.b16 %v1137, %v1136
        %v1141 = vpack.i.b16 %v1130, %v1126
        %v1142 = vshrl.u32 %v1126, 16
        %v1143 = vshrl.u32 %v1130, 16
        %v1144 = vpack.i.b16 %v1143, %v1142
        %v1147 = vpack.i.b16 %v1124, %v1118
        %v1148 = vshrl.u32 %v1118, 16
        %v1149 = vshrl.u32 %v1124, 16
        %v1150 = vpack.i.b16 %v1149, %v1148
        %v1153 = vpack.i.b16 %v1132, %v1128
        %v1154 = vshrl.u32 %v1128, 16
        %v1155 = vshrl.u32 %v1132, 16
        %v1156 = vpack.i.b16 %v1155, %v1154
        %v1159 = vunpack.c.l.s4 1983009808
        %v1160 = vunpack.c.0.s8 %v1159
        %v1161 = vperm.slane %v1135, %v1160
        %v1164 = vunpack.c.l.s4 1983009808
        %v1165 = vunpack.c.0.s8 %v1164
        %v1166 = vperm.slane %v1141, %v1165
        %v1167 = vrot.slane %v1166, 4
        %v1168 = vsel %vm879, %v1167, %v1161
        %v1169 = vrot.slane %v1161, 4
        %v1170 = vsel %vm879, %v1166, %v1169
        %v1172 = vunpack.c.l.s4 1934713408
        %v1173 = vunpack.c.0.s8 %v1172
        %v1174 = vperm.slane %v1168, %v1173
        %v1176 = vunpack.c.l.s4 1934713408
        %v1177 = vunpack.c.0.s8 %v1176
        %v1178 = vperm.slane %v1170, %v1177
        %v1179 = vrot.slane %v1174, 4
        %v1180 = vsel %vm879, 0, %v1179
        %v1181 = vrot.slane %v1178, 4
        %v1182 = vsel %vm879, 0, %v1181
        %v1185 = vunpack.c.l.s4 1983009808
        %v1186 = vunpack.c.0.s8 %v1185
        %v1187 = vperm.slane %v1138, %v1186
        %v1190 = vunpack.c.l.s4 1983009808
        %v1191 = vunpack.c.0.s8 %v1190
        %v1192 = vperm.slane %v1144, %v1191
        %v1193 = vrot.slane %v1192, 4
        %v1194 = vsel %vm879, %v1193, %v1187
        %v1195 = vrot.slane %v1187, 4
        %v1196 = vsel %vm879, %v1192, %v1195
        %v1198 = vunpack.c.l.s4 1934713408
        %v1199 = vunpack.c.0.s8 %v1198
        %v1200 = vperm.slane %v1194, %v1199
        %v1202 = vunpack.c.l.s4 1934713408
        %v1203 = vunpack.c.0.s8 %v1202
        %v1204 = vperm.slane %v1196, %v1203
        %v1205 = vrot.slane %v1200, 4
        %v1206 = vsel %vm879, 0, %v1205
        %v1207 = vrot.slane %v1204, 4
        %v1208 = vsel %vm879, 0, %v1207
        %v1211 = vunpack.c.l.s4 1983009808
        %v1212 = vunpack.c.0.s8 %v1211
        %v1213 = vperm.slane %v1147, %v1212
        %v1216 = vunpack.c.l.s4 1983009808
        %v1217 = vunpack.c.0.s8 %v1216
        %v1218 = vperm.slane %v1153, %v1217
        %v1219 = vrot.slane %v1218, 4
        %v1220 = vsel %vm879, %v1219, %v1213
        %v1221 = vrot.slane %v1213, 4
        %v1222 = vsel %vm879, %v1218, %v1221
        %v1224 = vunpack.c.l.s4 1934713408
        %v1225 = vunpack.c.0.s8 %v1224
        %v1226 = vperm.slane %v1220, %v1225
        %v1228 = vunpack.c.l.s4 1934713408
        %v1229 = vunpack.c.0.s8 %v1228
        %v1230 = vperm.slane %v1222, %v1229
        %v1231 = vrot.slane %v1226, 4
        %v1232 = vsel %vm879, 0, %v1231
        %v1233 = vrot.slane %v1230, 4
        %v1234 = vsel %vm879, 0, %v1233
        %v1237 = vunpack.c.l.s4 1983009808
        %v1238 = vunpack.c.0.s8 %v1237
        %v1239 = vperm.slane %v1150, %v1238
        %v1242 = vunpack.c.l.s4 1983009808
        %v1243 = vunpack.c.0.s8 %v1242
        %v1244 = vperm.slane %v1156, %v1243
        %v1245 = vrot.slane %v1244, 4
        %v1246 = vsel %vm879, %v1245, %v1239
        %v1247 = vrot.slane %v1239, 4
        %v1248 = vsel %vm879, %v1244, %v1247
        %v1250 = vunpack.c.l.s4 1934713408
        %v1251 = vunpack.c.0.s8 %v1250
        %v1252 = vperm.slane %v1246, %v1251
        %v1254 = vunpack.c.l.s4 1934713408
        %v1255 = vunpack.c.0.s8 %v1254
        %v1256 = vperm.slane %v1248, %v1255
        %v1257 = vrot.slane %v1252, 4
        %v1258 = vsel %vm879, 0, %v1257
        %v1259 = vrot.slane %v1256, 4
        %v1260 = vsel %vm879, 0, %v1259
        %v1261 = vsel %vm879, %v893, %v886
        %v1263 = vunpack.c.l.s4 1983009808
        %v1264 = vunpack.c.0.s8 %v1263
        %v1265 = vperm.slane %v1261, %v1264
        %v1266 = vrot.slane %v894, 4
        %v1267 = vsel %vm879, %v1266, %v892
        %v1269 = vunpack.c.l.s4 1983009808
        %v1270 = vunpack.c.0.s8 %v1269
        %v1271 = vperm.slane %v1267, %v1270
        %v1272 = vrot.slane %v1271, 4
        %v1273 = vsel %vm879, %v1272, %v1265
        %v1275 = vunpack.c.l.s4 1934713408
        %v1276 = vunpack.c.0.s8 %v1275
        %v1277 = vperm.slane %v1273, %v1276
        %v1278 = vrot.slane %v1277, 4
        %v1279 = vsel %vm879, 0, %v1278
        %v1280 = vsel %vm879, %v919, %v912
        %v1282 = vunpack.c.l.s4 1983009808
        %v1283 = vunpack.c.0.s8 %v1282
        %v1284 = vperm.slane %v1280, %v1283
        %v1285 = vrot.slane %v920, 4
        %v1286 = vsel %vm879, %v1285, %v918
        %v1288 = vunpack.c.l.s4 1983009808
        %v1289 = vunpack.c.0.s8 %v1288
        %v1290 = vperm.slane %v1286, %v1289
        %v1291 = vrot.slane %v1290, 4
        %v1292 = vsel %vm879, %v1291, %v1284
        %v1294 = vunpack.c.l.s4 1934713408
        %v1295 = vunpack.c.0.s8 %v1294
        %v1296 = vperm.slane %v1292, %v1295
        %v1297 = vrot.slane %v1296, 4
        %v1298 = vsel %vm879, 0, %v1297
        %v1299 = vsel %vm879, %v945, %v938
        %v1301 = vunpack.c.l.s4 1983009808
        %v1302 = vunpack.c.0.s8 %v1301
        %v1303 = vperm.slane %v1299, %v1302
        %v1304 = vrot.slane %v946, 4
        %v1305 = vsel %vm879, %v1304, %v944
        %v1307 = vunpack.c.l.s4 1983009808
        %v1308 = vunpack.c.0.s8 %v1307
        %v1309 = vperm.slane %v1305, %v1308
        %v1310 = vrot.slane %v1309, 4
        %v1311 = vsel %vm879, %v1310, %v1303
        %v1313 = vunpack.c.l.s4 1934713408
        %v1314 = vunpack.c.0.s8 %v1313
        %v1315 = vperm.slane %v1311, %v1314
        %v1316 = vrot.slane %v1315, 4
        %v1317 = vsel %vm879, 0, %v1316
        %v1318 = vsel %vm879, %v971, %v964
        %v1320 = vunpack.c.l.s4 1983009808
        %v1321 = vunpack.c.0.s8 %v1320
        %v1322 = vperm.slane %v1318, %v1321
        %v1323 = vrot.slane %v972, 4
        %v1324 = vsel %vm879, %v1323, %v970
        %v1326 = vunpack.c.l.s4 1983009808
        %v1327 = vunpack.c.0.s8 %v1326
        %v1328 = vperm.slane %v1324, %v1327
        %v1329 = vrot.slane %v1328, 4
        %v1330 = vsel %vm879, %v1329, %v1322
        %v1332 = vunpack.c.l.s4 1934713408
        %v1333 = vunpack.c.0.s8 %v1332
        %v1334 = vperm.slane %v1330, %v1333
        %v1335 = vrot.slane %v1334, 4
        %v1336 = vsel %vm879, 0, %v1335
        %v1339 = vpack.i.b16 %v1296, %v1277
        %v1340 = vshrl.u32 %v1277, 16
        %v1341 = vshrl.u32 %v1296, 16
        %v1342 = vpack.i.b16 %v1341, %v1340
        %v1345 = vpack.i.b16 %v1298, %v1279
        %v1346 = vshrl.u32 %v1279, 16
        %v1347 = vshrl.u32 %v1298, 16
        %v1348 = vpack.i.b16 %v1347, %v1346
        %v1351 = vpack.i.b16 %v1334, %v1315
        %v1352 = vshrl.u32 %v1315, 16
        %v1353 = vshrl.u32 %v1334, 16
        %v1354 = vpack.i.b16 %v1353, %v1352
        %v1357 = vpack.i.b16 %v1336, %v1317
        %v1358 = vshrl.u32 %v1317, 16
        %v1359 = vshrl.u32 %v1336, 16
        %v1360 = vpack.i.b16 %v1359, %v1358
        %v1361 = vsel %vm879, %v1037, %v1030
        %v1363 = vunpack.c.l.s4 1983009808
        %v1364 = vunpack.c.0.s8 %v1363
        %v1365 = vperm.slane %v1361, %v1364
        %v1366 = vrot.slane %v1038, 4
        %v1367 = vsel %vm879, %v1366, %v1036
        %v1369 = vunpack.c.l.s4 1983009808
        %v1370 = vunpack.c.0.s8 %v1369
        %v1371 = vperm.slane %v1367, %v1370
        %v1372 = vrot.slane %v1371, 4
        %v1373 = vsel %vm879, %v1372, %v1365
        %v1375 = vunpack.c.l.s4 1934713408
        %v1376 = vunpack.c.0.s8 %v1375
        %v1377 = vperm.slane %v1373, %v1376
        %v1378 = vrot.slane %v1377, 4
        %v1379 = vsel %vm879, 0, %v1378
        %v1380 = vsel %vm879, %v1063, %v1056
        %v1382 = vunpack.c.l.s4 1983009808
        %v1383 = vunpack.c.0.s8 %v1382
        %v1384 = vperm.slane %v1380, %v1383
        %v1385 = vrot.slane %v1064, 4
        %v1386 = vsel %vm879, %v1385, %v1062
        %v1388 = vunpack.c.l.s4 1983009808
        %v1389 = vunpack.c.0.s8 %v1388
        %v1390 = vperm.slane %v1386, %v1389
        %v1391 = vrot.slane %v1390, 4
        %v1392 = vsel %vm879, %v1391, %v1384
        %v1394 = vunpack.c.l.s4 1934713408
        %v1395 = vunpack.c.0.s8 %v1394
        %v1396 = vperm.slane %v1392, %v1395
        %v1397 = vrot.slane %v1396, 4
        %v1398 = vsel %vm879, 0, %v1397
        %v1399 = vsel %vm879, %v1089, %v1082
        %v1401 = vunpack.c.l.s4 1983009808
        %v1402 = vunpack.c.0.s8 %v1401
        %v1403 = vperm.slane %v1399, %v1402
        %v1404 = vrot.slane %v1090, 4
        %v1405 = vsel %vm879, %v1404, %v1088
        %v1407 = vunpack.c.l.s4 1983009808
        %v1408 = vunpack.c.0.s8 %v1407
        %v1409 = vperm.slane %v1405, %v1408
        %v1410 = vrot.slane %v1409, 4
        %v1411 = vsel %vm879, %v1410, %v1403
        %v1413 = vunpack.c.l.s4 1934713408
        %v1414 = vunpack.c.0.s8 %v1413
        %v1415 = vperm.slane %v1411, %v1414
        %v1416 = vrot.slane %v1415, 4
        %v1417 = vsel %vm879, 0, %v1416
        %v1418 = vsel %vm879, %v1115, %v1108
        %v1420 = vunpack.c.l.s4 1983009808
        %v1421 = vunpack.c.0.s8 %v1420
        %v1422 = vperm.slane %v1418, %v1421
        %v1423 = vrot.slane %v1116, 4
        %v1424 = vsel %vm879, %v1423, %v1114
        %v1426 = vunpack.c.l.s4 1983009808
        %v1427 = vunpack.c.0.s8 %v1426
        %v1428 = vperm.slane %v1424, %v1427
        %v1429 = vrot.slane %v1428, 4
        %v1430 = vsel %vm879, %v1429, %v1422
        %v1432 = vunpack.c.l.s4 1934713408
        %v1433 = vunpack.c.0.s8 %v1432
        %v1434 = vperm.slane %v1430, %v1433
        %v1435 = vrot.slane %v1434, 4
        %v1436 = vsel %vm879, 0, %v1435
        %v1439 = vpack.i.b16 %v1396, %v1377
        %v1440 = vshrl.u32 %v1377, 16
        %v1441 = vshrl.u32 %v1396, 16
        %v1442 = vpack.i.b16 %v1441, %v1440
        %v1445 = vpack.i.b16 %v1398, %v1379
        %v1446 = vshrl.u32 %v1379, 16
        %v1447 = vshrl.u32 %v1398, 16
        %v1448 = vpack.i.b16 %v1447, %v1446
        %v1451 = vpack.i.b16 %v1434, %v1415
        %v1452 = vshrl.u32 %v1415, 16
        %v1453 = vshrl.u32 %v1434, 16
        %v1454 = vpack.i.b16 %v1453, %v1452
        %v1457 = vpack.i.b16 %v1436, %v1417
        %v1458 = vshrl.u32 %v1417, 16
        %v1459 = vshrl.u32 %v1436, 16
        %v1460 = vpack.i.b16 %v1459, %v1458
        %v1461 = vsel %vm879, %v1181, %v1174
        %v1463 = vunpack.c.l.s4 1983009808
        %v1464 = vunpack.c.0.s8 %v1463
        %v1465 = vperm.slane %v1461, %v1464
        %v1466 = vrot.slane %v1182, 4
        %v1467 = vsel %vm879, %v1466, %v1180
        %v1469 = vunpack.c.l.s4 1983009808
        %v1470 = vunpack.c.0.s8 %v1469
        %v1471 = vperm.slane %v1467, %v1470
        %v1472 = vrot.slane %v1471, 4
        %v1473 = vsel %vm879, %v1472, %v1465
        %v1475 = vunpack.c.l.s4 1934713408
        %v1476 = vunpack.c.0.s8 %v1475
        %v1477 = vperm.slane %v1473, %v1476
        %v1478 = vrot.slane %v1477, 4
        %v1479 = vsel %vm879, 0, %v1478
        %v1480 = vsel %vm879, %v1207, %v1200
        %v1482 = vunpack.c.l.s4 1983009808
        %v1483 = vunpack.c.0.s8 %v1482
        %v1484 = vperm.slane %v1480, %v1483
        %v1485 = vrot.slane %v1208, 4
        %v1486 = vsel %vm879, %v1485, %v1206
        %v1488 = vunpack.c.l.s4 1983009808
        %v1489 = vunpack.c.0.s8 %v1488
        %v1490 = vperm.slane %v1486, %v1489
        %v1491 = vrot.slane %v1490, 4
        %v1492 = vsel %vm879, %v1491, %v1484
        %v1494 = vunpack.c.l.s4 1934713408
        %v1495 = vunpack.c.0.s8 %v1494
        %v1496 = vperm.slane %v1492, %v1495
        %v1497 = vrot.slane %v1496, 4
        %v1498 = vsel %vm879, 0, %v1497
        %v1499 = vsel %vm879, %v1233, %v1226
        %v1501 = vunpack.c.l.s4 1983009808
        %v1502 = vunpack.c.0.s8 %v1501
        %v1503 = vperm.slane %v1499, %v1502
        %v1504 = vrot.slane %v1234, 4
        %v1505 = vsel %vm879, %v1504, %v1232
        %v1507 = vunpack.c.l.s4 1983009808
        %v1508 = vunpack.c.0.s8 %v1507
        %v1509 = vperm.slane %v1505, %v1508
        %v1510 = vrot.slane %v1509, 4
        %v1511 = vsel %vm879, %v1510, %v1503
        %v1513 = vunpack.c.l.s4 1934713408
        %v1514 = vunpack.c.0.s8 %v1513
        %v1515 = vperm.slane %v1511, %v1514
        %v1516 = vrot.slane %v1515, 4
        %v1517 = vsel %vm879, 0, %v1516
        %v1518 = vsel %vm879, %v1259, %v1252
        %v1520 = vunpack.c.l.s4 1983009808
        %v1521 = vunpack.c.0.s8 %v1520
        %v1522 = vperm.slane %v1518, %v1521
        %v1523 = vrot.slane %v1260, 4
        %v1524 = vsel %vm879, %v1523, %v1258
        %v1526 = vunpack.c.l.s4 1983009808
        %v1527 = vunpack.c.0.s8 %v1526
        %v1528 = vperm.slane %v1524, %v1527
        %v1529 = vrot.slane %v1528, 4
        %v1530 = vsel %vm879, %v1529, %v1522
        %v1532 = vunpack.c.l.s4 1934713408
        %v1533 = vunpack.c.0.s8 %v1532
        %v1534 = vperm.slane %v1530, %v1533
        %v1535 = vrot.slane %v1534, 4
        %v1536 = vsel %vm879, 0, %v1535
        %v1539 = vpack.i.b16 %v1496, %v1477
        %v1540 = vshrl.u32 %v1477, 16
        %v1541 = vshrl.u32 %v1496, 16
        %v1542 = vpack.i.b16 %v1541, %v1540
        %v1545 = vpack.i.b16 %v1498, %v1479
        %v1546 = vshrl.u32 %v1479, 16
        %v1547 = vshrl.u32 %v1498, 16
        %v1548 = vpack.i.b16 %v1547, %v1546
        %v1551 = vpack.i.b16 %v1534, %v1515
        %v1552 = vshrl.u32 %v1515, 16
        %v1553 = vshrl.u32 %v1534, 16
        %v1554 = vpack.i.b16 %v1553, %v1552
        %v1557 = vpack.i.b16 %v1536, %v1517
        %v1558 = vshrl.u32 %v1517, 16
        %v1559 = vshrl.u32 %v1536, 16
        %v1560 = vpack.i.b16 %v1559, %v1558
        %v1561 = vlaneseq
        %v1562 = vshrl.u32 %v1561, 7
        %v1563 = vadd.s32 %v1562, 8
        %v1564 = vlaneseq
        %v1565 = vand.u32 %v1564, 127
        %vm1566 = vcmp.gt.s32.totalorder %v1565, %v1562
        %vm1567 = vcmp.gt.s32.totalorder %v1565, %v1563
        %v1568 = vunpack.c.l.b16 %v1339
        %v1569 = vunpack.c.l.b16 %v1351
        %v1570 = vpack.c.b16 %v1569, %v1568
        %v1571 = vunpack.c.l.b16 %v1439
        %v1572 = vunpack.c.l.b16 %v1451
        %v1573 = vpack.c.b16 %v1572, %v1571
        %vm1574 = vcmask 261120
        %v1576 = vsel %vm1574, %v1570, 0
        %v1579 = vsel %vm1574, %v1573, 0
        %1581 = vmatpush.bf16.xpose.msra.mxu0 0
        %1582 = vmatpush.bf16.xpose.msra.mxu0 0
        %1583 = vmatpush.bf16.xpose.msra.mxu0 0
        %1584 = vmatpush.bf16.xpose.msra.mxu0 0
        %1585 = vmatpush.bf16.xpose.msra.mxu0 0
        %1586 = vmatpush.bf16.xpose.msra.mxu0 0
        %1587 = vmatpush.bf16.xpose.msra.mxu0 0
        %1588 = vmatpush.bf16.xpose.msra.mxu0 %v1579
        %1589 = vmatmul.bf16.gmra.mxu0 %v1576
        %v1590 = vpop.f32.mrf.mxu0
        %v1591 = vadd.f32 0.0, %v1590
        %v1592 = vpop.f32.mrf.mxu0
        %v1593 = vadd.f32 0.0, %v1592
        %1594 = vdwg.mxu0
        %v1595 = vunpack.c.l.b16 %v1342
        %v1596 = vunpack.c.l.b16 %v1354
        %v1597 = vpack.c.b16 %v1596, %v1595
        %v1598 = vunpack.c.l.b16 %v1442
        %v1599 = vunpack.c.l.b16 %v1454
        %v1600 = vpack.c.b16 %v1599, %v1598
        %v1602 = vsel %vm1574, %v1597, 0
        %v1605 = vsel %vm1574, %v1600, 0
        %1607 = vmatpush.bf16.xpose.msra.mxu0 0
        %1608 = vmatpush.bf16.xpose.msra.mxu0 0
        %1609 = vmatpush.bf16.xpose.msra.mxu0 0
        %1610 = vmatpush.bf16.xpose.msra.mxu0 0
        %1611 = vmatpush.bf16.xpose.msra.mxu0 0
        %1612 = vmatpush.bf16.xpose.msra.mxu0 0
        %1613 = vmatpush.bf16.xpose.msra.mxu0 0
        %1614 = vmatpush.bf16.xpose.msra.mxu0 %v1605
        %1615 = vmatmul.bf16.gmra.mxu0 %v1602
        %v1616 = vpop.f32.mrf.mxu0
        %v1617 = vadd.f32 0.0, %v1616
        %v1618 = vpop.f32.mrf.mxu0
        %v1619 = vadd.f32 0.0, %v1618
        %1620 = vdwg.mxu0
        %v1621 = vunpack.c.l.b16 %v1345
        %v1622 = vunpack.c.l.b16 %v1357
        %v1623 = vpack.c.b16 %v1622, %v1621
        %v1624 = vunpack.c.l.b16 %v1445
        %v1625 = vunpack.c.l.b16 %v1457
        %v1626 = vpack.c.b16 %v1625, %v1624
        %v1628 = vsel %vm1574, %v1623, 0
        %v1631 = vsel %vm1574, %v1626, 0
        %1633 = vmatpush.bf16.xpose.msra.mxu0 0
        %1634 = vmatpush.bf16.xpose.msra.mxu0 0
        %1635 = vmatpush.bf16.xpose.msra.mxu0 0
        %1636 = vmatpush.bf16.xpose.msra.mxu0 0
        %1637 = vmatpush.bf16.xpose.msra.mxu0 0
        %1638 = vmatpush.bf16.xpose.msra.mxu0 0
        %1639 = vmatpush.bf16.xpose.msra.mxu0 0
        %1640 = vmatpush.bf16.xpose.msra.mxu0 %v1631
        %1641 = vmatmul.bf16.gmra.mxu0 %v1628
        %v1642 = vpop.f32.mrf.mxu0
        %v1643 = vadd.f32 0.0, %v1642
        %v1644 = vpop.f32.mrf.mxu0
        %v1645 = vadd.f32 0.0, %v1644
        %1646 = vdwg.mxu0
        %v1647 = vunpack.c.l.b16 %v1348
        %v1648 = vunpack.c.l.b16 %v1360
        %v1649 = vpack.c.b16 %v1648, %v1647
        %v1650 = vunpack.c.l.b16 %v1448
        %v1651 = vunpack.c.l.b16 %v1460
        %v1652 = vpack.c.b16 %v1651, %v1650
        %v1654 = vsel %vm1574, %v1649, 0
        %v1657 = vsel %vm1574, %v1652, 0
        %1659 = vmatpush.bf16.xpose.msra.mxu0 0
        %1660 = vmatpush.bf16.xpose.msra.mxu0 0
        %1661 = vmatpush.bf16.xpose.msra.mxu0 0
        %1662 = vmatpush.bf16.xpose.msra.mxu0 0
        %1663 = vmatpush.bf16.xpose.msra.mxu0 0
        %1664 = vmatpush.bf16.xpose.msra.mxu0 0
        %1665 = vmatpush.bf16.xpose.msra.mxu0 0
        %1666 = vmatpush.bf16.xpose.msra.mxu0 %v1657
        %1667 = vmatmul.bf16.gmra.mxu0 %v1654
        %v1668 = vpop.f32.mrf.mxu0
        %v1669 = vadd.f32 0.0, %v1668
        %v1670 = vpop.f32.mrf.mxu0
        %v1671 = vadd.f32 0.0, %v1670
        %1672 = vdwg.mxu0
        %v1673 = vmul.f32 %v1591, 0.17677669
        %v1674 = vmul.f32 %v1593, 0.17677669
        %v1675 = vmul.f32 %v1617, 0.17677669
        %v1676 = vmul.f32 %v1619, 0.17677669
        %v1677 = vmul.f32 %v1643, 0.17677669
        %v1678 = vmul.f32 %v1645, 0.17677669
        %v1679 = vmul.f32 %v1669, 0.17677669
        %v1680 = vmul.f32 %v1671, 0.17677669
        %v1681 = vsel %vm1566, 1, 0
        %v1682 = vsel %vm1567, 1, 0
        %vm1683 = vcmp.eq.s32.totalorder %v1681, 1
        %vm1684 = vcmp.eq.s32.totalorder %v1682, 1
        %v1685 = vsel %vm1683, -1e+30, %v1673
        %v1686 = vsel %vm1684, -1e+30, %v1674
        %v1687 = vsel %vm1683, -1e+30, %v1675
        %v1688 = vsel %vm1684, -1e+30, %v1676
        %v1689 = vsel %vm1683, -1e+30, %v1677
        %v1690 = vsel %vm1684, -1e+30, %v1678
        %v1691 = vsel %vm1683, -1e+30, %v1679
        %v1692 = vsel %vm1684, -1e+30, %v1680
        %vm1693 = vcmask 130048
        %v1694 = vsel %vm1693, %v1685, -inf
        %1695 = vmax.xlane.f32.xlu0 %v1694
        %v1696 = vpop.xlane.xlu0 %1695
        %v1697 = vsel %vm1693, %v1686, -inf
        %1698 = vmax.xlane.f32.xlu0 %v1697
        %v1699 = vpop.xlane.xlu0 %1698
        %v1700 = vsel %vm1693, %v1687, -inf
        %1701 = vmax.xlane.f32.xlu0 %v1700
        %v1702 = vpop.xlane.xlu0 %1701
        %v1703 = vsel %vm1693, %v1688, -inf
        %1704 = vmax.xlane.f32.xlu0 %v1703
        %v1705 = vpop.xlane.xlu0 %1704
        %v1706 = vsel %vm1693, %v1689, -inf
        %1707 = vmax.xlane.f32.xlu0 %v1706
        %v1708 = vpop.xlane.xlu0 %1707
        %v1709 = vsel %vm1693, %v1690, -inf
        %1710 = vmax.xlane.f32.xlu0 %v1709
        %v1711 = vpop.xlane.xlu0 %1710
        %v1712 = vsel %vm1693, %v1691, -inf
        %1713 = vmax.xlane.f32.xlu0 %v1712
        %v1714 = vpop.xlane.xlu0 %1713
        %v1715 = vsel %vm1693, %v1692, -inf
        %1716 = vmax.xlane.f32.xlu0 %v1715
        %v1717 = vpop.xlane.xlu0 %1716
        %v1718 = vsub.f32 %v1685, %v1696
        %v1719 = vsub.f32 %v1686, %v1699
        %v1720 = vsub.f32 %v1687, %v1702
        %v1721 = vsub.f32 %v1688, %v1705
        %v1722 = vsub.f32 %v1689, %v1708
        %v1723 = vsub.f32 %v1690, %v1711
        %v1724 = vsub.f32 %v1691, %v1714
        %v1725 = vsub.f32 %v1692, %v1717
        %v1726 = vmul.f32 %v1718, 1.442695
        %v1727 = vpow.pop %v1726
        %v1728 = vmul.f32 %v1719, 1.442695
        %v1729 = vpow.pop %v1728
        %v1730 = vmul.f32 %v1720, 1.442695
        %v1731 = vpow.pop %v1730
        %v1732 = vmul.f32 %v1721, 1.442695
        %v1733 = vpow.pop %v1732
        %v1734 = vmul.f32 %v1722, 1.442695
        %v1735 = vpow.pop %v1734
        %v1736 = vmul.f32 %v1723, 1.442695
        %v1737 = vpow.pop %v1736
        %v1738 = vmul.f32 %v1724, 1.442695
        %v1739 = vpow.pop %v1738
        %v1740 = vmul.f32 %v1725, 1.442695
        %v1741 = vpow.pop %v1740
        %v1742 = vsel %vm1693, %v1727, 0.0
        %1743 = vadd.xlane.f32.xlu0 %v1742
        %v1744 = vpop.xlane.xlu0 %1743
        %v1745 = vsel %vm1693, %v1729, 0.0
        %1746 = vadd.xlane.f32.xlu0 %v1745
        %v1747 = vpop.xlane.xlu0 %1746
        %v1748 = vsel %vm1693, %v1731, 0.0
        %1749 = vadd.xlane.f32.xlu0 %v1748
        %v1750 = vpop.xlane.xlu0 %1749
        %v1751 = vsel %vm1693, %v1733, 0.0
        %1752 = vadd.xlane.f32.xlu0 %v1751
        %v1753 = vpop.xlane.xlu0 %1752
        %v1754 = vsel %vm1693, %v1735, 0.0
        %1755 = vadd.xlane.f32.xlu0 %v1754
        %v1756 = vpop.xlane.xlu0 %1755
        %v1757 = vsel %vm1693, %v1737, 0.0
        %1758 = vadd.xlane.f32.xlu0 %v1757
        %v1759 = vpop.xlane.xlu0 %1758
        %v1760 = vsel %vm1693, %v1739, 0.0
        %1761 = vadd.xlane.f32.xlu0 %v1760
        %v1762 = vpop.xlane.xlu0 %1761
        %v1763 = vsel %vm1693, %v1741, 0.0
        %1764 = vadd.xlane.f32.xlu0 %v1763
        %v1765 = vpop.xlane.xlu0 %1764
        %v1766 = vrcp.pop %v1744
        %v1767 = vrcp.pop %v1747
        %v1768 = vrcp.pop %v1750
        %v1769 = vrcp.pop %v1753
        %v1770 = vrcp.pop %v1756
        %v1771 = vrcp.pop %v1759
        %v1772 = vrcp.pop %v1762
        %v1773 = vrcp.pop %v1765
        %v1774 = vmul.f32 %v1727, %v1766
        %v1775 = vmul.f32 %v1729, %v1767
        %v1776 = vmul.f32 %v1731, %v1768
        %v1777 = vmul.f32 %v1733, %v1769
        %v1778 = vmul.f32 %v1735, %v1770
        %v1779 = vmul.f32 %v1737, %v1771
        %v1780 = vmul.f32 %v1739, %v1772
        %v1781 = vmul.f32 %v1741, %v1773
        %v1782 = vpack.c.bf16 %v1774, %v1774
        %v1783 = vpack.c.bf16 %v1775, %v1775
        %v1784 = vpack.c.bf16 %v1776, %v1776
        %v1785 = vpack.c.bf16 %v1777, %v1777
        %v1786 = vpack.c.bf16 %v1778, %v1778
        %v1787 = vpack.c.bf16 %v1779, %v1779
        %v1788 = vpack.c.bf16 %v1780, %v1780
        %v1789 = vpack.c.bf16 %v1781, %v1781
        %v1792 = vunpack.c.l.b16 %v1782
        %v1793 = vunpack.c.l.b16 %v1783
        %v1794 = vpack.c.b16 %v1793, %v1792
        %v1795 = vunpack.c.l.b16 %v1539
        %v1796 = vunpack.c.l.b16 %v1551
        %v1797 = vpack.c.b16 %v1796, %v1795
        %v1800 = vsel %vm1693, %v1794, 0
        %1802 = vmatpush.bf16.msra.mxu0 0
        %1803 = vmatpush.bf16.msra.mxu0 0
        %1804 = vmatpush.bf16.msra.mxu0 0
        %1805 = vmatpush.bf16.msra.mxu0 0
        %1806 = vmatpush.bf16.msra.mxu0 0
        %1807 = vmatpush.bf16.msra.mxu0 0
        %1808 = vmatpush.bf16.msra.mxu0 0
        %1809 = vmatpush.bf16.msra.mxu0 %v1797
        %1810 = vmatmul.bf16.gmra.mxu0 %v1800
        %v1811 = vpop.f32.mrf.mxu0
        %v1812 = vadd.f32 0.0, %v1811
        %v1813 = vpop.f32.mrf.mxu0
        %v1814 = vadd.f32 0.0, %v1813
        %1815 = vdwg.mxu0
        %v1818 = vunpack.c.l.b16 %v1784
        %v1819 = vunpack.c.l.b16 %v1785
        %v1820 = vpack.c.b16 %v1819, %v1818
        %v1821 = vunpack.c.l.b16 %v1542
        %v1822 = vunpack.c.l.b16 %v1554
        %v1823 = vpack.c.b16 %v1822, %v1821
        %v1826 = vsel %vm1693, %v1820, 0
        %1828 = vmatpush.bf16.msra.mxu0 0
        %1829 = vmatpush.bf16.msra.mxu0 0
        %1830 = vmatpush.bf16.msra.mxu0 0
        %1831 = vmatpush.bf16.msra.mxu0 0
        %1832 = vmatpush.bf16.msra.mxu0 0
        %1833 = vmatpush.bf16.msra.mxu0 0
        %1834 = vmatpush.bf16.msra.mxu0 0
        %1835 = vmatpush.bf16.msra.mxu0 %v1823
        %1836 = vmatmul.bf16.gmra.mxu0 %v1826
        %v1837 = vpop.f32.mrf.mxu0
        %v1838 = vadd.f32 0.0, %v1837
        %v1839 = vpop.f32.mrf.mxu0
        %v1840 = vadd.f32 0.0, %v1839
        %1841 = vdwg.mxu0
        %v1844 = vunpack.c.l.b16 %v1786
        %v1845 = vunpack.c.l.b16 %v1787
        %v1846 = vpack.c.b16 %v1845, %v1844
        %v1847 = vunpack.c.l.b16 %v1545
        %v1848 = vunpack.c.l.b16 %v1557
        %v1849 = vpack.c.b16 %v1848, %v1847
        %v1852 = vsel %vm1693, %v1846, 0
        %1854 = vmatpush.bf16.msra.mxu0 0
        %1855 = vmatpush.bf16.msra.mxu0 0
        %1856 = vmatpush.bf16.msra.mxu0 0
        %1857 = vmatpush.bf16.msra.mxu0 0
        %1858 = vmatpush.bf16.msra.mxu0 0
        %1859 = vmatpush.bf16.msra.mxu0 0
        %1860 = vmatpush.bf16.msra.mxu0 0
        %1861 = vmatpush.bf16.msra.mxu0 %v1849
        %1862 = vmatmul.bf16.gmra.mxu0 %v1852
        %v1863 = vpop.f32.mrf.mxu0
        %v1864 = vadd.f32 0.0, %v1863
        %v1865 = vpop.f32.mrf.mxu0
        %v1866 = vadd.f32 0.0, %v1865
        %1867 = vdwg.mxu0
        %v1870 = vunpack.c.l.b16 %v1788
        %v1871 = vunpack.c.l.b16 %v1789
        %v1872 = vpack.c.b16 %v1871, %v1870
        %v1873 = vunpack.c.l.b16 %v1548
        %v1874 = vunpack.c.l.b16 %v1560
        %v1875 = vpack.c.b16 %v1874, %v1873
        %v1878 = vsel %vm1693, %v1872, 0
        %1880 = vmatpush.bf16.msra.mxu0 0
        %1881 = vmatpush.bf16.msra.mxu0 0
        %1882 = vmatpush.bf16.msra.mxu0 0
        %1883 = vmatpush.bf16.msra.mxu0 0
        %1884 = vmatpush.bf16.msra.mxu0 0
        %1885 = vmatpush.bf16.msra.mxu0 0
        %1886 = vmatpush.bf16.msra.mxu0 0
        %1887 = vmatpush.bf16.msra.mxu0 %v1875
        %1888 = vmatmul.bf16.gmra.mxu0 %v1878
        %v1889 = vpop.f32.mrf.mxu0
        %v1890 = vadd.f32 0.0, %v1889
        %v1891 = vpop.f32.mrf.mxu0
        %v1892 = vadd.f32 0.0, %v1891
        %1893 = vdwg.mxu0
        %v1894 = vrot.slane %v1864, 4
        %vm1895 = vcmask 1047556
        %v1896 = vsel %vm1895, %v1894, %v1812
        %v1897 = vrot.slane %v1812, 4
        %v1898 = vsel %vm1895, %v1864, %v1897
        %v1900 = vunpack.c.l.s4 1983009808
        %v1901 = vunpack.c.0.s8 %v1900
        %v1902 = vperm.slane %v1896, %v1901
        %v1904 = vunpack.c.l.s4 1983009808
        %v1905 = vunpack.c.0.s8 %v1904
        %v1906 = vperm.slane %v1898, %v1905
        %v1907 = vrot.slane %v1890, 4
        %v1908 = vsel %vm1895, %v1907, %v1838
        %v1909 = vrot.slane %v1838, 4
        %v1910 = vsel %vm1895, %v1890, %v1909
        %v1912 = vunpack.c.l.s4 1983009808
        %v1913 = vunpack.c.0.s8 %v1912
        %v1914 = vperm.slane %v1908, %v1913
        %v1916 = vunpack.c.l.s4 1983009808
        %v1917 = vunpack.c.0.s8 %v1916
        %v1918 = vperm.slane %v1910, %v1917
        %v1919 = vrot.slane %v1914, 4
        %v1920 = vsel %vm1895, %v1919, %v1902
        %v1921 = vrot.slane %v1902, 4
        %v1922 = vsel %vm1895, %v1914, %v1921
        %v1924 = vunpack.c.l.s4 1934713408
        %v1925 = vunpack.c.0.s8 %v1924
        %v1926 = vperm.slane %v1920, %v1925
        %v1928 = vunpack.c.l.s4 1934713408
        %v1929 = vunpack.c.0.s8 %v1928
        %v1930 = vperm.slane %v1922, %v1929
        %v1931 = vrot.slane %v1918, 4
        %v1932 = vsel %vm1895, %v1931, %v1906
        %v1933 = vrot.slane %v1906, 4
        %v1934 = vsel %vm1895, %v1918, %v1933
        %v1936 = vunpack.c.l.s4 1934713408
        %v1937 = vunpack.c.0.s8 %v1936
        %v1938 = vperm.slane %v1932, %v1937
        %v1940 = vunpack.c.l.s4 1934713408
        %v1941 = vunpack.c.0.s8 %v1940
        %v1942 = vperm.slane %v1934, %v1941
        %v1943 = vrot.slane %v1926, 4
        %v1944 = vsel %vm1895, 0.0, %v1943
        %v1945 = vrot.slane %v1930, 4
        %v1946 = vsel %vm1895, 0.0, %v1945
        %v1947 = vrot.slane %v1938, 4
        %v1948 = vsel %vm1895, 0.0, %v1947
        %v1949 = vrot.slane %v1942, 4
        %v1950 = vsel %vm1895, 0.0, %v1949
        %v1951 = vrot.slane %v1866, 4
        %v1952 = vsel %vm1895, %v1951, %v1814
        %v1953 = vrot.slane %v1814, 4
        %v1954 = vsel %vm1895, %v1866, %v1953
        %v1956 = vunpack.c.l.s4 1983009808
        %v1957 = vunpack.c.0.s8 %v1956
        %v1958 = vperm.slane %v1952, %v1957
        %v1960 = vunpack.c.l.s4 1983009808
        %v1961 = vunpack.c.0.s8 %v1960
        %v1962 = vperm.slane %v1954, %v1961
        %v1963 = vrot.slane %v1892, 4
        %v1964 = vsel %vm1895, %v1963, %v1840
        %v1965 = vrot.slane %v1840, 4
        %v1966 = vsel %vm1895, %v1892, %v1965
        %v1968 = vunpack.c.l.s4 1983009808
        %v1969 = vunpack.c.0.s8 %v1968
        %v1970 = vperm.slane %v1964, %v1969
        %v1972 = vunpack.c.l.s4 1983009808
        %v1973 = vunpack.c.0.s8 %v1972
        %v1974 = vperm.slane %v1966, %v1973
        %v1975 = vrot.slane %v1970, 4
        %v1976 = vsel %vm1895, %v1975, %v1958
        %v1977 = vrot.slane %v1958, 4
        %v1978 = vsel %vm1895, %v1970, %v1977
        %v1980 = vunpack.c.l.s4 1934713408
        %v1981 = vunpack.c.0.s8 %v1980
        %v1982 = vperm.slane %v1976, %v1981
        %v1984 = vunpack.c.l.s4 1934713408
        %v1985 = vunpack.c.0.s8 %v1984
        %v1986 = vperm.slane %v1978, %v1985
        %v1987 = vrot.slane %v1974, 4
        %v1988 = vsel %vm1895, %v1987, %v1962
        %v1989 = vrot.slane %v1962, 4
        %v1990 = vsel %vm1895, %v1974, %v1989
        %v1992 = vunpack.c.l.s4 1934713408
        %v1993 = vunpack.c.0.s8 %v1992
        %v1994 = vperm.slane %v1988, %v1993
        %v1996 = vunpack.c.l.s4 1934713408
        %v1997 = vunpack.c.0.s8 %v1996
        %v1998 = vperm.slane %v1990, %v1997
        %v1999 = vrot.slane %v1982, 4
        %v2000 = vsel %vm1895, 0.0, %v1999
        %v2001 = vrot.slane %v1986, 4
        %v2002 = vsel %vm1895, 0.0, %v2001
        %v2003 = vrot.slane %v1994, 4
        %v2004 = vsel %vm1895, 0.0, %v2003
        %v2005 = vrot.slane %v1998, 4
        %v2006 = vsel %vm1895, 0.0, %v2005
        %v2007 = vsel %vm1895, %v1945, %v1926
        %v2009 = vunpack.c.l.s4 1983009808
        %v2010 = vunpack.c.0.s8 %v2009
        %v2011 = vperm.slane %v2007, %v2010
        %v2012 = vrot.slane %v1946, 4
        %v2013 = vsel %vm1895, %v2012, %v1944
        %v2015 = vunpack.c.l.s4 1983009808
        %v2016 = vunpack.c.0.s8 %v2015
        %v2017 = vperm.slane %v2013, %v2016
        %v2018 = vsel %vm1895, %v1949, %v1938
        %v2020 = vunpack.c.l.s4 1983009808
        %v2021 = vunpack.c.0.s8 %v2020
        %v2022 = vperm.slane %v2018, %v2021
        %v2023 = vrot.slane %v1950, 4
        %v2024 = vsel %vm1895, %v2023, %v1948
        %v2026 = vunpack.c.l.s4 1983009808
        %v2027 = vunpack.c.0.s8 %v2026
        %v2028 = vperm.slane %v2024, %v2027
        %v2029 = vrot.slane %v2017, 4
        %v2030 = vsel %vm1895, %v2029, %v2011
        %v2031 = vrot.slane %v2011, 4
        %v2032 = vsel %vm1895, %v2017, %v2031
        %v2034 = vunpack.c.l.s4 1934713408
        %v2035 = vunpack.c.0.s8 %v2034
        %v2036 = vperm.slane %v2030, %v2035
        %v2038 = vunpack.c.l.s4 1934713408
        %v2039 = vunpack.c.0.s8 %v2038
        %v2040 = vperm.slane %v2032, %v2039
        %v2041 = vrot.slane %v2028, 4
        %v2042 = vsel %vm1895, %v2041, %v2022
        %v2043 = vrot.slane %v2022, 4
        %v2044 = vsel %vm1895, %v2028, %v2043
        %v2046 = vunpack.c.l.s4 1934713408
        %v2047 = vunpack.c.0.s8 %v2046
        %v2048 = vperm.slane %v2042, %v2047
        %v2050 = vunpack.c.l.s4 1934713408
        %v2051 = vunpack.c.0.s8 %v2050
        %v2052 = vperm.slane %v2044, %v2051
        %v2053 = vrot.slane %v2048, 4
        %v2054 = vsel %vm1895, %v2053, %v2036
        %v2055 = vrot.slane %v2036, 4
        %v2056 = vsel %vm1895, %v2048, %v2055
        %v2057 = vrot.slane %v2052, 4
        %v2058 = vsel %vm1895, %v2057, %v2040
        %v2059 = vrot.slane %v2040, 4
        %v2060 = vsel %vm1895, %v2052, %v2059
        %v2061 = vsel %vm1895, %v2001, %v1982
        %v2063 = vunpack.c.l.s4 1983009808
        %v2064 = vunpack.c.0.s8 %v2063
        %v2065 = vperm.slane %v2061, %v2064
        %v2066 = vrot.slane %v2002, 4
        %v2067 = vsel %vm1895, %v2066, %v2000
        %v2069 = vunpack.c.l.s4 1983009808
        %v2070 = vunpack.c.0.s8 %v2069
        %v2071 = vperm.slane %v2067, %v2070
        %v2072 = vsel %vm1895, %v2005, %v1994
        %v2074 = vunpack.c.l.s4 1983009808
        %v2075 = vunpack.c.0.s8 %v2074
        %v2076 = vperm.slane %v2072, %v2075
        %v2077 = vrot.slane %v2006, 4
        %v2078 = vsel %vm1895, %v2077, %v2004
        %v2080 = vunpack.c.l.s4 1983009808
        %v2081 = vunpack.c.0.s8 %v2080
        %v2082 = vperm.slane %v2078, %v2081
        %v2083 = vrot.slane %v2071, 4
        %v2084 = vsel %vm1895, %v2083, %v2065
        %v2085 = vrot.slane %v2065, 4
        %v2086 = vsel %vm1895, %v2071, %v2085
        %v2088 = vunpack.c.l.s4 1934713408
        %v2089 = vunpack.c.0.s8 %v2088
        %v2090 = vperm.slane %v2084, %v2089
        %v2092 = vunpack.c.l.s4 1934713408
        %v2093 = vunpack.c.0.s8 %v2092
        %v2094 = vperm.slane %v2086, %v2093
        %v2095 = vrot.slane %v2082, 4
        %v2096 = vsel %vm1895, %v2095, %v2076
        %v2097 = vrot.slane %v2076, 4
        %v2098 = vsel %vm1895, %v2082, %v2097
        %v2100 = vunpack.c.l.s4 1934713408
        %v2101 = vunpack.c.0.s8 %v2100
        %v2102 = vperm.slane %v2096, %v2101
        %v2104 = vunpack.c.l.s4 1934713408
        %v2105 = vunpack.c.0.s8 %v2104
        %v2106 = vperm.slane %v2098, %v2105
        %v2107 = vrot.slane %v2102, 4
        %v2108 = vsel %vm1895, %v2107, %v2090
        %v2109 = vrot.slane %v2090, 4
        %v2110 = vsel %vm1895, %v2102, %v2109
        %v2111 = vrot.slane %v2106, 4
        %v2112 = vsel %vm1895, %v2111, %v2094
        %v2113 = vrot.slane %v2094, 4
        %v2114 = vsel %vm1895, %v2106, %v2113
        %2117 = vrot.lane.b32.xlu0 %v2056, 32
        %v2118 = vpop.permute.xlu0 %2117
        %2119 = vrot.lane.b32.xlu0 %v2110, 32
        %v2120 = vpop.permute.xlu0 %2119
        %2125 = vrot.lane.b32.xlu0 %v2058, 64
        %v2126 = vpop.permute.xlu0 %2125
        %2127 = vrot.lane.b32.xlu0 %v2112, 64
        %v2128 = vpop.permute.xlu0 %2127
        %2133 = vrot.lane.b32.xlu0 %v2060, 96
        %v2134 = vpop.permute.xlu0 %2133
        %2135 = vrot.lane.b32.xlu0 %v2114, 96
        %v2136 = vpop.permute.xlu0 %2135
        %v2139 = vsel %vm1574, %v2054, %v2118
        %v2140 = vsel %vm1574, %v2108, %v2120
        %vm2141 = vcmask 523264
        %v2142 = vsel %vm2141, %v2139, %v2126
        %v2143 = vsel %vm2141, %v2140, %v2128
        %vm2144 = vcmask 785408
        %v2145 = vsel %vm2144, %v2142, %v2134
        %v2146 = vsel %vm2144, %v2143, %v2136
        %v2147 = vpack.c.bf16 %v2146, %v2145
        %v2148 = vld [vmem:[#allocation8] sm:$0xf]
        %v2149 = vld [vmem:[#allocation8 + $0x4] sm:$0xf]
        %v2150 = vld [vmem:[#allocation8 + $0x8] sm:$0xf]
        %v2151 = vld [vmem:[#allocation8 + $0xc] sm:$0xf]
        %v2152 = vld [vmem:[#allocation8 + $0x10] sm:$0xf]
        %v2153 = vld [vmem:[#allocation8 + $0x14] sm:$0xf]
        %v2154 = vld [vmem:[#allocation8 + $0x18] sm:$0xf]
        %v2155 = vld [vmem:[#allocation8 + $0x1c] sm:$0xf]
        %v2156 = vld [vmem:[#allocation8 + $0x20] sm:$0xf]
        %v2157 = vld [vmem:[#allocation8 + $0x24] sm:$0xf]
        %v2158 = vld [vmem:[#allocation8 + $0x28] sm:$0xf]
        %v2159 = vld [vmem:[#allocation8 + $0x2c] sm:$0xf]
        %v2160 = vld [vmem:[#allocation8 + $0x30] sm:$0xf]
        %v2161 = vld [vmem:[#allocation8 + $0x34] sm:$0xf]
        %v2162 = vld [vmem:[#allocation8 + $0x38] sm:$0xf]
        %v2163 = vld [vmem:[#allocation8 + $0x3c] sm:$0xf]
        %v2164 = vld [vmem:[%s5] sm:$0x1]
        %v2166 = vperm.slane %v2164, 0
        %v2184 = vunpack.c.l.b16 %v2148
        %v2185 = vunpack.c.l.b16 %v2149
        %v2186 = vunpack.c.l.b16 %v2150
        %v2187 = vunpack.c.l.b16 %v2151
        %v2188 = vunpack.c.l.b16 %v2152
        %v2189 = vunpack.c.l.b16 %v2153
        %v2190 = vunpack.c.l.b16 %v2154
        %v2191 = vunpack.c.l.b16 %v2155
        %v2192 = vunpack.c.l.b16 %v2156
        %v2193 = vunpack.c.l.b16 %v2157
        %v2194 = vunpack.c.l.b16 %v2158
        %v2195 = vunpack.c.l.b16 %v2159
        %v2196 = vunpack.c.l.b16 %v2160
        %v2197 = vunpack.c.l.b16 %v2161
        %v2198 = vunpack.c.l.b16 %v2162
        %v2199 = vunpack.c.l.b16 %v2163
        %v2200 = vpack.c.b16 %v2185, %v2184
        %v2201 = vpack.c.b16 %v2187, %v2186
        %v2202 = vpack.c.b16 %v2189, %v2188
        %v2203 = vpack.c.b16 %v2191, %v2190
        %v2204 = vpack.c.b16 %v2193, %v2192
        %v2205 = vpack.c.b16 %v2195, %v2194
        %v2206 = vpack.c.b16 %v2197, %v2196
        %v2207 = vpack.c.b16 %v2199, %v2198
        %2216 = vmatpush.bf16.msra.mxu0 %v2207
        %2217 = vmatpush.bf16.msra.mxu0 %v2206
        %2218 = vmatpush.bf16.msra.mxu0 %v2205
        %2219 = vmatpush.bf16.msra.mxu0 %v2204
        %2220 = vmatpush.bf16.msra.mxu0 %v2203
        %2221 = vmatpush.bf16.msra.mxu0 %v2202
        %2222 = vmatpush.bf16.msra.mxu0 %v2201
        %2223 = vmatpush.bf16.msra.mxu0 %v2200
        %2224 = vmatmul.bf16.gmra.mxu0 %v2147
        %v2225 = vpop.f32.mrf.mxu0
        %v2226 = vadd.f32 %v2166, %v2225
        %v2227 = vpop.f32.mrf.mxu0
        %v2228 = vadd.f32 %v2166, %v2227
        %2229 = vdwg.mxu0
        %v2230 = vadd.f32 %v2226, %v532
        %v2231 = vadd.f32 %v2228, %v533
        %v2232 = vld [vmem:[%s6] sm:$0x1]
        %v2233 = vld [vmem:[#allocation10] sm:$0x1]
        %2234 = vadd.xlane.f32.xlu0 %v2230
        %v2235 = vpop.xlane.xlu0 %2234
        %2236 = vadd.xlane.f32.xlu0 %v2231
        %v2237 = vpop.xlane.xlu0 %2236
        %v2238 = vmul.f32 %v2235, %v546
        %v2239 = vmul.f32 %v2237, %v546
        %v2240 = vsub.f32 %v2230, %v2238
        %v2241 = vsub.f32 %v2231, %v2239
        %v2242 = vmul.f32 %v2240, %v2240
        %v2243 = vmul.f32 %v2241, %v2241
        %2244 = vadd.xlane.f32.xlu0 %v2242
        %v2245 = vpop.xlane.xlu0 %2244
        %2246 = vadd.xlane.f32.xlu0 %v2243
        %v2247 = vpop.xlane.xlu0 %2246
        %v2248 = vmul.f32 %v2245, %v546
        %v2249 = vmul.f32 %v2247, %v546
        %v2251 = vperm.slane %v2232, 0
        %v2253 = vmul.f32 %v2251, %v2240
        %v2254 = vmul.f32 %v2251, %v2241
        %v2255 = vadd.f32 %v2248, 1e-05
        %v2256 = vadd.f32 %v2249, 1e-05
        %v2257 = vrsqrt.pop %v2255
        %v2258 = vmul.f32 %v2257, %v2255
        %v2259 = vmul.f32 %v2258, %v2257
        %v2260 = vmul.f32 0.5, %v2259
        %v2261 = vsub.f32 1.5, %v2260
        %v2262 = vmul.f32 %v2257, %v2261
        %v2263 = vmul.f32 %v2255, %v2262
        %vm2264 = vcmp.eq.f32.partialorder %v2255, inf
        %v2265 = vsel %vm2264, %v2255, %v2263
        %vm2266 = vcmp.eq.f32.partialorder %v2255, 0.0
        %v2267 = vand.u32 %v2255, 2147483648
        %v2268 = vsel %vm2266, %v2267, %v2265
        %v2269 = vrsqrt.pop %v2256
        %v2270 = vmul.f32 %v2269, %v2256
        %v2271 = vmul.f32 %v2270, %v2269
        %v2272 = vmul.f32 0.5, %v2271
        %v2273 = vsub.f32 1.5, %v2272
        %v2274 = vmul.f32 %v2269, %v2273
        %v2275 = vmul.f32 %v2256, %v2274
        %vm2276 = vcmp.eq.f32.partialorder %v2256, inf
        %v2277 = vsel %vm2276, %v2256, %v2275
        %vm2278 = vcmp.eq.f32.partialorder %v2256, 0.0
        %v2279 = vand.u32 %v2256, 2147483648
        %v2280 = vsel %vm2278, %v2279, %v2277
        %v2281 = vrcp.pop %v2268
        %v2282 = vmul.f32 %v2268, %v2281
        %v2283 = vsub.f32 1.0, %v2282
        %v2284 = vmul.f32 %v2281, %v2283
        %v2285 = vadd.f32 %v2281, %v2284
        %vm2286 = vweird.f32 %v2268
        %vm2287 = vweird.f32 %v2281
        %vm2288 = vmor %vm2286, %vm2287
        %v2289 = vsel %vm2288, %v2281, %v2285
        %v2290 = vand.u32 2147483647, %v2268
        %vm2291 = vcmp.eq.f32.partialorder %v2290, 8.507059e+37
        %v2292 = vand.u32 %v2268, 2147483648
        %v2293 = vor.u32 1.1754944e-38, %v2292
        %v2294 = vsel %vm2291, %v2293, %v2289
        %v2295 = vmul.f32 %v2253, %v2294
        %v2296 = vrcp.pop %v2280
        %v2297 = vmul.f32 %v2280, %v2296
        %v2298 = vsub.f32 1.0, %v2297
        %v2299 = vmul.f32 %v2296, %v2298
        %v2300 = vadd.f32 %v2296, %v2299
        %vm2301 = vweird.f32 %v2280
        %vm2302 = vweird.f32 %v2296
        %vm2303 = vmor %vm2301, %vm2302
        %v2304 = vsel %vm2303, %v2296, %v2300
        %v2305 = vand.u32 2147483647, %v2280
        %vm2306 = vcmp.eq.f32.partialorder %v2305, 8.507059e+37
        %v2307 = vand.u32 %v2280, 2147483648
        %v2308 = vor.u32 1.1754944e-38, %v2307
        %v2309 = vsel %vm2306, %v2308, %v2304
        %v2310 = vmul.f32 %v2254, %v2309
        %v2312 = vperm.slane %v2233, 0
        %v2314 = vadd.f32 %v2295, %v2312
        %v2315 = vadd.f32 %v2310, %v2312
        %v2316 = vpack.c.bf16 %v2315, %v2314
        %v2317 = vld [vmem:[#allocation11] sm:$0xff]
        %v2318 = vld [vmem:[#allocation11 + $0x8] sm:$0xff]
        %v2319 = vld [vmem:[#allocation11 + $0x10] sm:$0xff]
        %v2320 = vld [vmem:[#allocation11 + $0x18] sm:$0xff]
        %v2321 = vld [vmem:[#allocation11 + $0x20] sm:$0xff]
        %v2322 = vld [vmem:[#allocation11 + $0x28] sm:$0xff]
        %v2323 = vld [vmem:[#allocation11 + $0x30] sm:$0xff]
        %v2324 = vld [vmem:[#allocation11 + $0x38] sm:$0xff]
        %v2325 = vld [vmem:[#allocation11 + $0x40] sm:$0xff]
        %v2326 = vld [vmem:[#allocation11 + $0x48] sm:$0xff]
        %v2327 = vld [vmem:[#allocation11 + $0x50] sm:$0xff]
        %v2328 = vld [vmem:[#allocation11 + $0x58] sm:$0xff]
        %v2329 = vld [vmem:[#allocation11 + $0x60] sm:$0xff]
        %v2330 = vld [vmem:[#allocation11 + $0x68] sm:$0xff]
        %v2331 = vld [vmem:[#allocation11 + $0x70] sm:$0xff]
        %v2332 = vld [vmem:[#allocation11 + $0x78] sm:$0xff]
        %v2333 = vld [vmem:[#allocation11 + $0x80] sm:$0xff]
        %v2334 = vld [vmem:[#allocation11 + $0x88] sm:$0xff]
        %v2335 = vld [vmem:[#allocation11 + $0x90] sm:$0xff]
        %v2336 = vld [vmem:[#allocation11 + $0x98] sm:$0xff]
        %v2337 = vld [vmem:[#allocation11 + $0xa0] sm:$0xff]
        %v2338 = vld [vmem:[#allocation11 + $0xa8] sm:$0xff]
        %v2339 = vld [vmem:[#allocation11 + $0xb0] sm:$0xff]
        %v2340 = vld [vmem:[#allocation11 + $0xb8] sm:$0xff]
        %v2341 = vld [vmem:[#allocation11 + $0xc0] sm:$0xff]
        %v2342 = vld [vmem:[#allocation11 + $0xc8] sm:$0xff]
        %v2343 = vld [vmem:[#allocation11 + $0xd0] sm:$0xff]
        %v2344 = vld [vmem:[#allocation11 + $0xd8] sm:$0xff]
        %v2345 = vld [vmem:[#allocation11 + $0xe0] sm:$0xff]
        %v2346 = vld [vmem:[#allocation11 + $0xe8] sm:$0xff]
        %v2347 = vld [vmem:[#allocation11 + $0xf0] sm:$0xff]
        %v2348 = vld [vmem:[#allocation11 + $0xf8] sm:$0xff]
        %v2349 = vld [vmem:[%s9] sm:$0xf]
        %v2351 = vperm.slane %v2349, 0
        %v2352 = vperm.slane %v2349, 1
        %v2353 = vperm.slane %v2349, 2
        %v2354 = vperm.slane %v2349, 3
        %v2391 = vunpack.c.l.b16 %v2317
        %v2392 = vunpack.c.h.b16 %v2317
        %v2393 = vunpack.c.l.b16 %v2318
        %v2394 = vunpack.c.h.b16 %v2318
        %v2395 = vunpack.c.l.b16 %v2319
        %v2396 = vunpack.c.h.b16 %v2319
        %v2397 = vunpack.c.l.b16 %v2320
        %v2398 = vunpack.c.h.b16 %v2320
        %v2399 = vunpack.c.l.b16 %v2321
        %v2400 = vunpack.c.h.b16 %v2321
        %v2401 = vunpack.c.l.b16 %v2322
        %v2402 = vunpack.c.h.b16 %v2322
        %v2403 = vunpack.c.l.b16 %v2323
        %v2404 = vunpack.c.h.b16 %v2323
        %v2405 = vunpack.c.l.b16 %v2324
        %v2406 = vunpack.c.h.b16 %v2324
        %v2407 = vunpack.c.l.b16 %v2325
        %v2408 = vunpack.c.h.b16 %v2325
        %v2409 = vunpack.c.l.b16 %v2326
        %v2410 = vunpack.c.h.b16 %v2326
        %v2411 = vunpack.c.l.b16 %v2327
        %v2412 = vunpack.c.h.b16 %v2327
        %v2413 = vunpack.c.l.b16 %v2328
        %v2414 = vunpack.c.h.b16 %v2328
        %v2415 = vunpack.c.l.b16 %v2329
        %v2416 = vunpack.c.h.b16 %v2329
        %v2417 = vunpack.c.l.b16 %v2330
        %v2418 = vunpack.c.h.b16 %v2330
        %v2419 = vunpack.c.l.b16 %v2331
        %v2420 = vunpack.c.h.b16 %v2331
        %v2421 = vunpack.c.l.b16 %v2332
        %v2422 = vunpack.c.h.b16 %v2332
        %v2423 = vunpack.c.l.b16 %v2333
        %v2424 = vunpack.c.h.b16 %v2333
        %v2425 = vunpack.c.l.b16 %v2334
        %v2426 = vunpack.c.h.b16 %v2334
        %v2427 = vunpack.c.l.b16 %v2335
        %v2428 = vunpack.c.h.b16 %v2335
        %v2429 = vunpack.c.l.b16 %v2336
        %v2430 = vunpack.c.h.b16 %v2336
        %v2431 = vunpack.c.l.b16 %v2337
        %v2432 = vunpack.c.h.b16 %v2337
        %v2433 = vunpack.c.l.b16 %v2338
        %v2434 = vunpack.c.h.b16 %v2338
        %v2435 = vunpack.c.l.b16 %v2339
        %v2436 = vunpack.c.h.b16 %v2339
        %v2437 = vunpack.c.l.b16 %v2340
        %v2438 = vunpack.c.h.b16 %v2340
        %v2439 = vunpack.c.l.b16 %v2341
        %v2440 = vunpack.c.h.b16 %v2341
        %v2441 = vunpack.c.l.b16 %v2342
        %v2442 = vunpack.c.h.b16 %v2342
        %v2443 = vunpack.c.l.b16 %v2343
        %v2444 = vunpack.c.h.b16 %v2343
        %v2445 = vunpack.c.l.b16 %v2344
        %v2446 = vunpack.c.h.b16 %v2344
        %v2447 = vunpack.c.l.b16 %v2345
        %v2448 = vunpack.c.h.b16 %v2345
        %v2449 = vunpack.c.l.b16 %v2346
        %v2450 = vunpack.c.h.b16 %v2346
        %v2451 = vunpack.c.l.b16 %v2347
        %v2452 = vunpack.c.h.b16 %v2347
        %v2453 = vunpack.c.l.b16 %v2348
        %v2454 = vunpack.c.h.b16 %v2348
        %v2455 = vpack.c.b16 %v2395, %v2391
        %v2456 = vpack.c.b16 %v2396, %v2392
        %v2457 = vpack.c.b16 %v2397, %v2393
        %v2458 = vpack.c.b16 %v2398, %v2394
        %v2459 = vpack.c.b16 %v2403, %v2399
        %v2460 = vpack.c.b16 %v2404, %v2400
        %v2461 = vpack.c.b16 %v2405, %v2401
        %v2462 = vpack.c.b16 %v2406, %v2402
        %v2463 = vpack.c.b16 %v2411, %v2407
        %v2464 = vpack.c.b16 %v2412, %v2408
        %v2465 = vpack.c.b16 %v2413, %v2409
        %v2466 = vpack.c.b16 %v2414, %v2410
        %v2467 = vpack.c.b16 %v2419, %v2415
        %v2468 = vpack.c.b16 %v2420, %v2416
        %v2469 = vpack.c.b16 %v2421, %v2417
        %v2470 = vpack.c.b16 %v2422, %v2418
        %v2471 = vpack.c.b16 %v2427, %v2423
        %v2472 = vpack.c.b16 %v2428, %v2424
        %v2473 = vpack.c.b16 %v2429, %v2425
        %v2474 = vpack.c.b16 %v2430, %v2426
        %v2475 = vpack.c.b16 %v2435, %v2431
        %v2476 = vpack.c.b16 %v2436, %v2432
        %v2477 = vpack.c.b16 %v2437, %v2433
        %v2478 = vpack.c.b16 %v2438, %v2434
        %v2479 = vpack.c.b16 %v2443, %v2439
        %v2480 = vpack.c.b16 %v2444, %v2440
        %v2481 = vpack.c.b16 %v2445, %v2441
        %v2482 = vpack.c.b16 %v2446, %v2442
        %v2483 = vpack.c.b16 %v2451, %v2447
        %v2484 = vpack.c.b16 %v2452, %v2448
        %v2485 = vpack.c.b16 %v2453, %v2449
        %v2486 = vpack.c.b16 %v2454, %v2450
        %2519 = vmatpush.bf16.msra.mxu0 %v2483
        %2520 = vmatpush.bf16.msra.mxu0 %v2479
        %2521 = vmatpush.bf16.msra.mxu0 %v2475
        %2522 = vmatpush.bf16.msra.mxu0 %v2471
        %2523 = vmatpush.bf16.msra.mxu0 %v2467
        %2524 = vmatpush.bf16.msra.mxu0 %v2463
        %2525 = vmatpush.bf16.msra.mxu0 %v2459
        %2526 = vmatpush.bf16.msra.mxu0 %v2455
        %2527 = vmatmul.bf16.gmra.mxu0 %v2316
        %v2528 = vpop.f32.mrf.mxu0
        %v2529 = vadd.f32 %v2351, %v2528
        %v2530 = vpop.f32.mrf.mxu0
        %v2531 = vadd.f32 %v2351, %v2530
        %2532 = vdwg.mxu0
        %2533 = vmatpush.bf16.msra.mxu0 %v2484
        %2534 = vmatpush.bf16.msra.mxu0 %v2480
        %2535 = vmatpush.bf16.msra.mxu0 %v2476
        %2536 = vmatpush.bf16.msra.mxu0 %v2472
        %2537 = vmatpush.bf16.msra.mxu0 %v2468
        %2538 = vmatpush.bf16.msra.mxu0 %v2464
        %2539 = vmatpush.bf16.msra.mxu0 %v2460
        %2540 = vmatpush.bf16.msra.mxu0 %v2456
        %2541 = vmatmul.bf16.gmra.mxu0 %v2316
        %v2542 = vpop.f32.mrf.mxu0
        %v2543 = vadd.f32 %v2352, %v2542
        %v2544 = vpop.f32.mrf.mxu0
        %v2545 = vadd.f32 %v2352, %v2544
        %2546 = vdwg.mxu0
        %2547 = vmatpush.bf16.msra.mxu0 %v2485
        %2548 = vmatpush.bf16.msra.mxu0 %v2481
        %2549 = vmatpush.bf16.msra.mxu0 %v2477
        %2550 = vmatpush.bf16.msra.mxu0 %v2473
        %2551 = vmatpush.bf16.msra.mxu0 %v2469
        %2552 = vmatpush.bf16.msra.mxu0 %v2465
        %2553 = vmatpush.bf16.msra.mxu0 %v2461
        %2554 = vmatpush.bf16.msra.mxu0 %v2457
        %2555 = vmatmul.bf16.gmra.mxu0 %v2316
        %v2556 = vpop.f32.mrf.mxu0
        %v2557 = vadd.f32 %v2353, %v2556
        %v2558 = vpop.f32.mrf.mxu0
        %v2559 = vadd.f32 %v2353, %v2558
        %2560 = vdwg.mxu0
        %2561 = vmatpush.bf16.msra.mxu0 %v2486
        %2562 = vmatpush.bf16.msra.mxu0 %v2482
        %2563 = vmatpush.bf16.msra.mxu0 %v2478
        %2564 = vmatpush.bf16.msra.mxu0 %v2474
        %2565 = vmatpush.bf16.msra.mxu0 %v2470
        %2566 = vmatpush.bf16.msra.mxu0 %v2466
        %2567 = vmatpush.bf16.msra.mxu0 %v2462
        %2568 = vmatpush.bf16.msra.mxu0 %v2458
        %2569 = vmatmul.bf16.gmra.mxu0 %v2316
        %v2570 = vpop.f32.mrf.mxu0
        %v2571 = vadd.f32 %v2354, %v2570
        %v2572 = vpop.f32.mrf.mxu0
        %v2573 = vadd.f32 %v2354, %v2572
        %2574 = vdwg.mxu0
        %v2575 = vmul.f32 %v2529, 0.5
        %v2576 = vmul.f32 %v2543, 0.5
        %v2577 = vmul.f32 %v2557, 0.5
        %v2578 = vmul.f32 %v2571, 0.5
        %v2579 = vmul.f32 %v2531, 0.5
        %v2580 = vmul.f32 %v2545, 0.5
        %v2581 = vmul.f32 %v2559, 0.5
        %v2582 = vmul.f32 %v2573, 0.5
        %v2583 = vmul.f32 %v2529, %v2529
        %v2584 = vmul.f32 %v2543, %v2543
        %v2585 = vmul.f32 %v2557, %v2557
        %v2586 = vmul.f32 %v2571, %v2571
        %v2587 = vmul.f32 %v2531, %v2531
        %v2588 = vmul.f32 %v2545, %v2545
        %v2589 = vmul.f32 %v2559, %v2559
        %v2590 = vmul.f32 %v2573, %v2573
        %v2591 = vmul.f32 %v2529, %v2583
        %v2592 = vmul.f32 %v2543, %v2584
        %v2593 = vmul.f32 %v2557, %v2585
        %v2594 = vmul.f32 %v2571, %v2586
        %v2595 = vmul.f32 %v2531, %v2587
        %v2596 = vmul.f32 %v2545, %v2588
        %v2597 = vmul.f32 %v2559, %v2589
        %v2598 = vmul.f32 %v2573, %v2590
        %v2599 = vmul.f32 %v2591, 0.044715
        %v2600 = vmul.f32 %v2592, 0.044715
        %v2601 = vmul.f32 %v2593, 0.044715
        %v2602 = vmul.f32 %v2594, 0.044715
        %v2603 = vmul.f32 %v2595, 0.044715
        %v2604 = vmul.f32 %v2596, 0.044715
        %v2605 = vmul.f32 %v2597, 0.044715
        %v2606 = vmul.f32 %v2598, 0.044715
        %v2607 = vadd.f32 %v2529, %v2599
        %v2608 = vadd.f32 %v2543, %v2600
        %v2609 = vadd.f32 %v2557, %v2601
        %v2610 = vadd.f32 %v2571, %v2602
        %v2611 = vadd.f32 %v2531, %v2603
        %v2612 = vadd.f32 %v2545, %v2604
        %v2613 = vadd.f32 %v2559, %v2605
        %v2614 = vadd.f32 %v2573, %v2606
        %v2615 = vmul.f32 %v2607, 0.7978845
        %v2616 = vmul.f32 %v2608, 0.7978845
        %v2617 = vmul.f32 %v2609, 0.7978845
        %v2618 = vmul.f32 %v2610, 0.7978845
        %v2619 = vmul.f32 %v2611, 0.7978845
        %v2620 = vmul.f32 %v2612, 0.7978845
        %v2621 = vmul.f32 %v2613, 0.7978845
        %v2622 = vmul.f32 %v2614, 0.7978845
        %v2623 = vtanh.pop %v2615
        %v2624 = vtanh.pop %v2616
        %v2625 = vtanh.pop %v2617
        %v2626 = vtanh.pop %v2618
        %v2627 = vtanh.pop %v2619
        %v2628 = vtanh.pop %v2620
        %v2629 = vtanh.pop %v2621
        %v2630 = vtanh.pop %v2622
        %v2631 = vadd.f32 %v2623, 1.0
        %v2632 = vadd.f32 %v2624, 1.0
        %v2633 = vadd.f32 %v2625, 1.0
        %v2634 = vadd.f32 %v2626, 1.0
        %v2635 = vadd.f32 %v2627, 1.0
        %v2636 = vadd.f32 %v2628, 1.0
        %v2637 = vadd.f32 %v2629, 1.0
        %v2638 = vadd.f32 %v2630, 1.0
        %v2639 = vmul.f32 %v2575, %v2631
        %v2640 = vmul.f32 %v2576, %v2632
        %v2641 = vmul.f32 %v2577, %v2633
        %v2642 = vmul.f32 %v2578, %v2634
        %v2643 = vmul.f32 %v2579, %v2635
        %v2644 = vmul.f32 %v2580, %v2636
        %v2645 = vmul.f32 %v2581, %v2637
        %v2646 = vmul.f32 %v2582, %v2638
        %v2647 = vpack.c.bf16 %v2643, %v2639
        %v2648 = vpack.c.bf16 %v2644, %v2640
        %v2649 = vpack.c.bf16 %v2645, %v2641
        %v2650 = vpack.c.bf16 %v2646, %v2642
        %v2651 = vld [vmem:[#allocation13] sm:$0xf]
        %v2652 = vld [vmem:[#allocation13 + $0x4] sm:$0xf]
        %v2653 = vld [vmem:[#allocation13 + $0x8] sm:$0xf]
        %v2654 = vld [vmem:[#allocation13 + $0xc] sm:$0xf]
        %v2655 = vld [vmem:[#allocation13 + $0x10] sm:$0xf]
        %v2656 = vld [vmem:[#allocation13 + $0x14] sm:$0xf]
        %v2657 = vld [vmem:[#allocation13 + $0x18] sm:$0xf]
        %v2658 = vld [vmem:[#allocation13 + $0x1c] sm:$0xf]
        %v2659 = vld [vmem:[#allocation13 + $0x20] sm:$0xf]
        %v2660 = vld [vmem:[#allocation13 + $0x24] sm:$0xf]
        %v2661 = vld [vmem:[#allocation13 + $0x28] sm:$0xf]
        %v2662 = vld [vmem:[#allocation13 + $0x2c] sm:$0xf]
        %v2663 = vld [vmem:[#allocation13 + $0x30] sm:$0xf]
        %v2664 = vld [vmem:[#allocation13 + $0x34] sm:$0xf]
        %v2665 = vld [vmem:[#allocation13 + $0x38] sm:$0xf]
        %v2666 = vld [vmem:[#allocation13 + $0x3c] sm:$0xf]
        %v2667 = vld [vmem:[#allocation13 + $0x40] sm:$0xf]
        %v2668 = vld [vmem:[#allocation13 + $0x44] sm:$0xf]
        %v2669 = vld [vmem:[#allocation13 + $0x48] sm:$0xf]
        %v2670 = vld [vmem:[#allocation13 + $0x4c] sm:$0xf]
        %v2671 = vld [vmem:[#allocation13 + $0x50] sm:$0xf]
        %v2672 = vld [vmem:[#allocation13 + $0x54] sm:$0xf]
        %v2673 = vld [vmem:[#allocation13 + $0x58] sm:$0xf]
        %v2674 = vld [vmem:[#allocation13 + $0x5c] sm:$0xf]
        %v2675 = vld [vmem:[#allocation13 + $0x60] sm:$0xf]
        %v2676 = vld [vmem:[#allocation13 + $0x64] sm:$0xf]
        %v2677 = vld [vmem:[#allocation13 + $0x68] sm:$0xf]
        %v2678 = vld [vmem:[#allocation13 + $0x6c] sm:$0xf]
        %v2679 = vld [vmem:[#allocation13 + $0x70] sm:$0xf]
        %v2680 = vld [vmem:[#allocation13 + $0x74] sm:$0xf]
        %v2681 = vld [vmem:[#allocation13 + $0x78] sm:$0xf]
        %v2682 = vld [vmem:[#allocation13 + $0x7c] sm:$0xf]
        %v2683 = vld [vmem:[#allocation13 + $0x80] sm:$0xf]
        %v2684 = vld [vmem:[#allocation13 + $0x84] sm:$0xf]
        %v2685 = vld [vmem:[#allocation13 + $0x88] sm:$0xf]
        %v2686 = vld [vmem:[#allocation13 + $0x8c] sm:$0xf]
        %v2687 = vld [vmem:[#allocation13 + $0x90] sm:$0xf]
        %v2688 = vld [vmem:[#allocation13 + $0x94] sm:$0xf]
        %v2689 = vld [vmem:[#allocation13 + $0x98] sm:$0xf]
        %v2690 = vld [vmem:[#allocation13 + $0x9c] sm:$0xf]
        %v2691 = vld [vmem:[#allocation13 + $0xa0] sm:$0xf]
        %v2692 = vld [vmem:[#allocation13 + $0xa4] sm:$0xf]
        %v2693 = vld [vmem:[#allocation13 + $0xa8] sm:$0xf]
        %v2694 = vld [vmem:[#allocation13 + $0xac] sm:$0xf]
        %v2695 = vld [vmem:[#allocation13 + $0xb0] sm:$0xf]
        %v2696 = vld [vmem:[#allocation13 + $0xb4] sm:$0xf]
        %v2697 = vld [vmem:[#allocation13 + $0xb8] sm:$0xf]
        %v2698 = vld [vmem:[#allocation13 + $0xbc] sm:$0xf]
        %v2699 = vld [vmem:[#allocation13 + $0xc0] sm:$0xf]
        %v2700 = vld [vmem:[#allocation13 + $0xc4] sm:$0xf]
        %v2701 = vld [vmem:[#allocation13 + $0xc8] sm:$0xf]
        %v2702 = vld [vmem:[#allocation13 + $0xcc] sm:$0xf]
        %v2703 = vld [vmem:[#allocation13 + $0xd0] sm:$0xf]
        %v2704 = vld [vmem:[#allocation13 + $0xd4] sm:$0xf]
        %v2705 = vld [vmem:[#allocation13 + $0xd8] sm:$0xf]
        %v2706 = vld [vmem:[#allocation13 + $0xdc] sm:$0xf]
        %v2707 = vld [vmem:[#allocation13 + $0xe0] sm:$0xf]
        %v2708 = vld [vmem:[#allocation13 + $0xe4] sm:$0xf]
        %v2709 = vld [vmem:[#allocation13 + $0xe8] sm:$0xf]
        %v2710 = vld [vmem:[#allocation13 + $0xec] sm:$0xf]
        %v2711 = vld [vmem:[#allocation13 + $0xf0] sm:$0xf]
        %v2712 = vld [vmem:[#allocation13 + $0xf4] sm:$0xf]
        %v2713 = vld [vmem:[#allocation13 + $0xf8] sm:$0xf]
        %v2714 = vld [vmem:[#allocation13 + $0xfc] sm:$0xf]
        %v2715 = vld [vmem:[%s11] sm:$0x1]
        %v2717 = vperm.slane %v2715, 0
        %v2783 = vunpack.c.l.b16 %v2651
        %v2784 = vunpack.c.l.b16 %v2652
        %v2785 = vunpack.c.l.b16 %v2653
        %v2786 = vunpack.c.l.b16 %v2654
        %v2787 = vunpack.c.l.b16 %v2655
        %v2788 = vunpack.c.l.b16 %v2656
        %v2789 = vunpack.c.l.b16 %v2657
        %v2790 = vunpack.c.l.b16 %v2658
        %v2791 = vunpack.c.l.b16 %v2659
        %v2792 = vunpack.c.l.b16 %v2660
        %v2793 = vunpack.c.l.b16 %v2661
        %v2794 = vunpack.c.l.b16 %v2662
        %v2795 = vunpack.c.l.b16 %v2663
        %v2796 = vunpack.c.l.b16 %v2664
        %v2797 = vunpack.c.l.b16 %v2665
        %v2798 = vunpack.c.l.b16 %v2666
        %v2799 = vunpack.c.l.b16 %v2667
        %v2800 = vunpack.c.l.b16 %v2668
        %v2801 = vunpack.c.l.b16 %v2669
        %v2802 = vunpack.c.l.b16 %v2670
        %v2803 = vunpack.c.l.b16 %v2671
        %v2804 = vunpack.c.l.b16 %v2672
        %v2805 = vunpack.c.l.b16 %v2673
        %v2806 = vunpack.c.l.b16 %v2674
        %v2807 = vunpack.c.l.b16 %v2675
        %v2808 = vunpack.c.l.b16 %v2676
        %v2809 = vunpack.c.l.b16 %v2677
        %v2810 = vunpack.c.l.b16 %v2678
        %v2811 = vunpack.c.l.b16 %v2679
        %v2812 = vunpack.c.l.b16 %v2680
        %v2813 = vunpack.c.l.b16 %v2681
        %v2814 = vunpack.c.l.b16 %v2682
        %v2815 = vunpack.c.l.b16 %v2683
        %v2816 = vunpack.c.l.b16 %v2684
        %v2817 = vunpack.c.l.b16 %v2685
        %v2818 = vunpack.c.l.b16 %v2686
        %v2819 = vunpack.c.l.b16 %v2687
        %v2820 = vunpack.c.l.b16 %v2688
        %v2821 = vunpack.c.l.b16 %v2689
        %v2822 = vunpack.c.l.b16 %v2690
        %v2823 = vunpack.c.l.b16 %v2691
        %v2824 = vunpack.c.l.b16 %v2692
        %v2825 = vunpack.c.l.b16 %v2693
        %v2826 = vunpack.c.l.b16 %v2694
        %v2827 = vunpack.c.l.b16 %v2695
        %v2828 = vunpack.c.l.b16 %v2696
        %v2829 = vunpack.c.l.b16 %v2697
        %v2830 = vunpack.c.l.b16 %v2698
        %v2831 = vunpack.c.l.b16 %v2699
        %v2832 = vunpack.c.l.b16 %v2700
        %v2833 = vunpack.c.l.b16 %v2701
        %v2834 = vunpack.c.l.b16 %v2702
        %v2835 = vunpack.c.l.b16 %v2703
        %v2836 = vunpack.c.l.b16 %v2704
        %v2837 = vunpack.c.l.b16 %v2705
        %v2838 = vunpack.c.l.b16 %v2706
        %v2839 = vunpack.c.l.b16 %v2707
        %v2840 = vunpack.c.l.b16 %v2708
        %v2841 = vunpack.c.l.b16 %v2709
        %v2842 = vunpack.c.l.b16 %v2710
        %v2843 = vunpack.c.l.b16 %v2711
        %v2844 = vunpack.c.l.b16 %v2712
        %v2845 = vunpack.c.l.b16 %v2713
        %v2846 = vunpack.c.l.b16 %v2714
        %v2847 = vpack.c.b16 %v2784, %v2783
        %v2848 = vpack.c.b16 %v2786, %v2785
        %v2849 = vpack.c.b16 %v2788, %v2787
        %v2850 = vpack.c.b16 %v2790, %v2789
        %v2851 = vpack.c.b16 %v2792, %v2791
        %v2852 = vpack.c.b16 %v2794, %v2793
        %v2853 = vpack.c.b16 %v2796, %v2795
        %v2854 = vpack.c.b16 %v2798, %v2797
        %v2855 = vpack.c.b16 %v2800, %v2799
        %v2856 = vpack.c.b16 %v2802, %v2801
        %v2857 = vpack.c.b16 %v2804, %v2803
        %v2858 = vpack.c.b16 %v2806, %v2805
        %v2859 = vpack.c.b16 %v2808, %v2807
        %v2860 = vpack.c.b16 %v2810, %v2809
        %v2861 = vpack.c.b16 %v2812, %v2811
        %v2862 = vpack.c.b16 %v2814, %v2813
        %v2863 = vpack.c.b16 %v2816, %v2815
        %v2864 = vpack.c.b16 %v2818, %v2817
        %v2865 = vpack.c.b16 %v2820, %v2819
        %v2866 = vpack.c.b16 %v2822, %v2821
        %v2867 = vpack.c.b16 %v2824, %v2823
        %v2868 = vpack.c.b16 %v2826, %v2825
        %v2869 = vpack.c.b16 %v2828, %v2827
        %v2870 = vpack.c.b16 %v2830, %v2829
        %v2871 = vpack.c.b16 %v2832, %v2831
        %v2872 = vpack.c.b16 %v2834, %v2833
        %v2873 = vpack.c.b16 %v2836, %v2835
        %v2874 = vpack.c.b16 %v2838, %v2837
        %v2875 = vpack.c.b16 %v2840, %v2839
        %v2876 = vpack.c.b16 %v2842, %v2841
        %v2877 = vpack.c.b16 %v2844, %v2843
        %v2878 = vpack.c.b16 %v2846, %v2845
        %2911 = vmatpush.bf16.msra.mxu0 %v2854
        %2912 = vmatpush.bf16.msra.mxu0 %v2853
        %2913 = vmatpush.bf16.msra.mxu0 %v2852
        %2914 = vmatpush.bf16.msra.mxu0 %v2851
        %2915 = vmatpush.bf16.msra.mxu0 %v2850
        %2916 = vmatpush.bf16.msra.mxu0 %v2849
        %2917 = vmatpush.bf16.msra.mxu0 %v2848
        %2918 = vmatpush.bf16.msra.mxu0 %v2847
        %2919 = vmatmul.bf16.gmra.mxu0 %v2647
        %v2920 = vpop.f32.mrf.mxu0
        %v2921 = vadd.f32 %v2717, %v2920
        %v2922 = vpop.f32.mrf.mxu0
        %v2923 = vadd.f32 %v2717, %v2922
        %2924 = vdwg.mxu0
        %2925 = vmatpush.bf16.msra.mxu0 %v2862
        %2926 = vmatpush.bf16.msra.mxu0 %v2861
        %2927 = vmatpush.bf16.msra.mxu0 %v2860
        %2928 = vmatpush.bf16.msra.mxu0 %v2859
        %2929 = vmatpush.bf16.msra.mxu0 %v2858
        %2930 = vmatpush.bf16.msra.mxu0 %v2857
        %2931 = vmatpush.bf16.msra.mxu0 %v2856
        %2932 = vmatpush.bf16.msra.mxu0 %v2855
        %2933 = vmatmul.bf16.gmra.mxu0 %v2648
        %v2934 = vpop.f32.mrf.mxu0
        %v2935 = vadd.f32 %v2921, %v2934
        %v2936 = vpop.f32.mrf.mxu0
        %v2937 = vadd.f32 %v2923, %v2936
        %2938 = vdwg.mxu0
        %2939 = vmatpush.bf16.msra.mxu0 %v2870
        %2940 = vmatpush.bf16.msra.mxu0 %v2869
        %2941 = vmatpush.bf16.msra.mxu0 %v2868
        %2942 = vmatpush.bf16.msra.mxu0 %v2867
        %2943 = vmatpush.bf16.msra.mxu0 %v2866
        %2944 = vmatpush.bf16.msra.mxu0 %v2865
        %2945 = vmatpush.bf16.msra.mxu0 %v2864
        %2946 = vmatpush.bf16.msra.mxu0 %v2863
        %2947 = vmatmul.bf16.gmra.mxu0 %v2649
        %v2948 = vpop.f32.mrf.mxu0
        %v2949 = vadd.f32 %v2935, %v2948
        %v2950 = vpop.f32.mrf.mxu0
        %v2951 = vadd.f32 %v2937, %v2950
        %2952 = vdwg.mxu0
        %2953 = vmatpush.bf16.msra.mxu0 %v2878
        %2954 = vmatpush.bf16.msra.mxu0 %v2877
        %2955 = vmatpush.bf16.msra.mxu0 %v2876
        %2956 = vmatpush.bf16.msra.mxu0 %v2875
        %2957 = vmatpush.bf16.msra.mxu0 %v2874
        %2958 = vmatpush.bf16.msra.mxu0 %v2873
        %2959 = vmatpush.bf16.msra.mxu0 %v2872
        %2960 = vmatpush.bf16.msra.mxu0 %v2871
        %2961 = vmatmul.bf16.gmra.mxu0 %v2650
        %v2962 = vpop.f32.mrf.mxu0
        %v2963 = vadd.f32 %v2949, %v2962
        %v2964 = vpop.f32.mrf.mxu0
        %v2965 = vadd.f32 %v2951, %v2964
        %2966 = vdwg.mxu0
        %v2967 = vadd.f32 %v2963, %v2230
        %v2968 = vadd.f32 %v2965, %v2231
        %v2969 = vpack.c.bf16 %v2967, %v2967
        %v2970 = vpack.c.bf16 %v2968, %v2968
        %2971 = vst [vmem:[%s528] sm:$0xf] %v2969
        %2972 = vst [vmem:[%s528 + $0x4] sm:$0xf] %v2970
        %s2973 = sand.u32 %s297, 1
        %s2974 = scalar_lea.sflag [#allocation4], %s2973
        %s2975 = sand.u32 %s297, 1
        %s2976 = smul.addr %s2975, 8
        %s2977 = scalar_lea.vmem [#allocation14], %s2976
        // Predicated region
        $region97: #{tpu_custom_call.1} parent=67 // pred_check
          %p2978 = pneg %p307
        $region98: #{tpu_custom_call.1} parent=67 // pred_check_branch
          %2980 = sbr.rel (%p2978) target = $region100
        $region99: #{tpu_custom_call.1} parent=67 // pred_region
          %2982 = vsyncadd %s2974, 0
          %s2983 = smul.addr %s32, 2
          %s2984 = smul.addr %s2983, 4
          %s2985 = scalar_lea.hbm %s12, %s2984
          %s2986 = sshll.u32 %s2977, 4
          %s2987 = int_to_ptr.vmem [resolvable:$true] %s2986
          %s2988 = sshll.u32 %s2985, 4
          %s2989 = int_to_ptr.hbm [resolvable:$true] %s2988
          %2994 = dma.vmem_to_hbm [thread:$0]  %s2987, 128, %s2989, %s2974, 64, 64, 4
        $region100: #{tpu_custom_call.1} parent=67 // pred_fallthru
          _
      $region68: #{tpu_custom_call.1} parent=5 // pred_fallthru
        _
      %p2995 = scmp.le.s32.totalorder 2, %s27
      // Predicated region
      $region101: #{tpu_custom_call.1} parent=5 // pred_check
        %p2996 = pneg %p2995
      $region102: #{tpu_custom_call.1} parent=5 // pred_check_branch
        %2998 = sbr.rel (%p2996) target = $region104
      $region103: #{tpu_custom_call.1} parent=5 // pred_region
        %s2999 = ssub.s32 %s27, 2
        // Predicated region
        $region105: #{tpu_custom_call.1} parent=103 // pred_check
          %p3000 = pneg %p313
        $region106: #{tpu_custom_call.1} parent=103 // pred_check_branch
          %3002 = sbr.rel (%p3000) target = $region108
        $region107: #{tpu_custom_call.1} parent=103 // pred_region
          %s3003 = sand.u32 %s298, 1
          %s3004 = scalar_lea.sflag [#allocation4], %s3003
          %s3005 = sand.u32 %s298, 1
          %s3006 = smul.addr %s3005, 8
          %s3007 = scalar_lea.vmem [#allocation14], %s3006
          %3009 = dma.done %s3004, 128
        $region108: #{tpu_custom_call.1} parent=103 // pred_fallthru
          _
      $region104: #{tpu_custom_call.1} parent=5 // pred_fallthru
        _
    $region6: #{tpu_custom_call.1} parent=1 // loop_footer
      %s31 = sadd.s32 1, %s27
    $region7: #{tpu_custom_call.1} parent=1 // loop_footer_branch
      %26 = sbr.rel target = $region3
    $region8: #{tpu_custom_call.1} parent=1 // loop_exit
      _
    %3010 = vsyncpa [#allocation3], 1
    %s3011 = scalar_lea.sflag [#allocation3], 1
    %3012 = vsyncpa %s3011, 1
    %3013 = vsyncpa [#allocation6], 1
    %3014 = vsyncpa [#allocation9], 1
    %3015 = vsyncpa [#allocation12], 1
    %3016 = vsyncpa [#allocation4], 1
    %s3017 = scalar_lea.sflag [#allocation4], 1
    %3018 = vsyncpa %s3017, 1

</llo_original>
